<compile_context>
chip_gen: v7x
topology: tpu7x:2x2x1
jax: 0.10.0
libtpu: 0.0.40
codegen_flags: <defaults>
</compile_context>

<pallas_src>
import functools

import jax
import jax.numpy as jnp
import numpy as np
from jax import lax
from jax.experimental import pallas as pl
from jax.experimental.pallas import tpu as pltpu


def _round_up(x, m):
    return ((x + m - 1) // m) * m


def _num_tensorcores():
    # v7x exposes 2 TensorCores per chip to a single Pallas program (sharded
    # via a "parallel" grid axis); v5e/v6e have 1.  Fall back to 1 on doubt.
    try:
        kind = (getattr(jax.devices()[0], "device_kind", "") or "").lower()
        if "v7" in kind:
            return 2
    except Exception:
        pass
    return 1


def qnetwork_kernel(x_ref, w1_ref, b1_ref, w2_ref, b2_ref, w3_ref, b3_ref, o_ref):
    # fc1 + ReLU  (f32 matmul, f32 accumulation)
    h1 = jnp.dot(x_ref[...], w1_ref[...],
                 preferred_element_type=jnp.float32,
                 precision=lax.Precision.HIGHEST)
    h1 = jnp.maximum(h1 + b1_ref[...], 0.0)
    # fc2 + ReLU
    h2 = jnp.dot(h1, w2_ref[...],
                 preferred_element_type=jnp.float32,
                 precision=lax.Precision.HIGHEST)
    h2 = jnp.maximum(h2 + b2_ref[...], 0.0)
    # output layer (no activation); narrow (un-padded) store.
    q = jnp.dot(h2, w3_ref[...],
                preferred_element_type=jnp.float32,
                precision=lax.Precision.HIGHEST)
    o_ref[...] = (q + b3_ref[...]).astype(o_ref.dtype)


@functools.partial(jax.jit, static_argnames=("tile_m_cap", "num_tiles"))
def _qnetwork_forward_impl(state, w1, b1, w2, b2, w3, b3, *, tile_m_cap, num_tiles):
    B, in_size = state.shape
    h1_size = w1.shape[1]
    h2_size = w2.shape[1]
    out_size = w3.shape[1]

    # Tile selection: one tile per TensorCore (collapses to a single grid step
    # on v5e/v6e; >=2 steps on v7x so both cores get work), rows per tile
    # capped at tile_m_cap for very large replay batches.
    Bp = _round_up(B, 8)
    tm = min(_round_up(pl.cdiv(Bp, num_tiles), 8), tile_m_cap)
    Bp = _round_up(Bp, tm)
    grid = (Bp // tm,)
    xp = jnp.pad(state, ((0, Bp - B), (0, 0))) if Bp != B else state

    # Weights/biases: constant index_map -> DMA'd once, VMEM-resident.
    const = lambda i: (0, 0)
    in_specs = [
        pl.BlockSpec((tm, in_size), lambda i: (i, 0)),     # x tile
        pl.BlockSpec((in_size, h1_size), const),           # w1
        pl.BlockSpec((1, h1_size), const),                 # b1
        pl.BlockSpec((h1_size, h2_size), const),           # w2
        pl.BlockSpec((1, h2_size), const),                 # b2
        pl.BlockSpec((h2_size, out_size), const),          # w3
        pl.BlockSpec((1, out_size), const),                # b3
    ]
    # Output block last dim equals the full array dim (out_size), so no lane
    # padding / external slice is needed.
    out_spec = pl.BlockSpec((tm, out_size), lambda i: (i, 0))

    flops = 2 * Bp * (in_size * h1_size + h1_size * h2_size + h2_size * out_size)
    bytes_accessed = 4 * (
        Bp * in_size
        + in_size * h1_size + h1_size
        + h1_size * h2_size + h2_size
        + h2_size * out_size + out_size
        + Bp * out_size
    )

    out = pl.pallas_call(
        qnetwork_kernel,
        out_shape=jax.ShapeDtypeStruct((Bp, out_size), jnp.float32),
        grid=grid,
        in_specs=in_specs,
        out_specs=out_spec,
        compiler_params=pltpu.CompilerParams(
            dimension_semantics=("parallel",),
            vmem_limit_bytes=32 * 1024 * 1024,
        ),
        cost_estimate=pl.CostEstimate(
            flops=flops, transcendentals=0, bytes_accessed=bytes_accessed),
    )(xp, w1, b1, w2, b2, w3, b3)

    return out[:B] if Bp != B else out


def qnetwork_forward(state, params, *, tile_m_cap=4096):
    """state: [B, input_size] float32. params: dict of (w1,b1,w2,b2,w3,b3)."""
    return _qnetwork_forward_impl(
        state,
        params["w1"], params["b1"],
        params["w2"], params["b2"],
        params["w3"], params["b3"],
        tile_m_cap=tile_m_cap,
        num_tiles=_num_tensorcores(),
    )


def init_params(key, input_size, output_size):
    """Deterministic init mimicking nn.Linear default (uniform +-1/sqrt(fan_in))."""
    def linear(k, fan_in, fan_out):
        kw, kb = jax.random.split(k)
        bound = 1.0 / np.sqrt(fan_in)
        # Stored as [in, out] (transposed vs. PyTorch's [out, in]).
        w = jax.random.uniform(kw, (fan_in, fan_out), jnp.float32, -bound, bound)
        b = jax.random.uniform(kb, (1, fan_out), jnp.float32, -bound, bound)
        return w, b

    k1, k2, k3 = jax.random.split(key, 3)
    w1, b1 = linear(k1, input_size, 64)
    w2, b2 = linear(k2, 64, 32)
    w3, b3 = linear(k3, 32, output_size)
    return {"w1": w1, "b1": b1, "w2": w2, "b2": b2, "w3": w3, "b3": b3}


if __name__ == "__main__":
    input_size = 16
    output_size = 4
    batch = 32            # small test batch; collapses to 1 grid step (2 on v7x)

    key = jax.random.PRNGKey(0)
    k_params, k_state = jax.random.split(key)

    params = init_params(k_params, input_size, output_size)
    state = jax.random.normal(k_state, (batch, input_size), jnp.float32)

    q_values = qnetwork_forward(state, params)
    q_values = jax.block_until_ready(q_values)

    # Reference check in plain JAX / f32 (same math as the PyTorch forward).
    h1 = jnp.maximum(state @ params["w1"] + params["b1"], 0.0)
    h2 = jnp.maximum(h1 @ params["w2"] + params["b2"], 0.0)
    ref = h2 @ params["w3"] + params["b3"]
    np.testing.assert_allclose(np.asarray(q_values), np.asarray(ref),
                               rtol=2e-3, atol=2e-3)

    assert q_values.shape == (batch, output_size)
    print("KERNEL_OK")
</pallas_src>

<mosaic_0001>
module attributes {stable_mosaic.version = 11 : i64} {
  func.func @qnetwork_kernel(%arg0: i32, %arg1: memref<32x16xf32, #tpu.memory_space<vmem>>, %arg2: memref<16x64xf32, #tpu.memory_space<vmem>>, %arg3: memref<1x64xf32, #tpu.memory_space<vmem>>, %arg4: memref<64x32xf32, #tpu.memory_space<vmem>>, %arg5: memref<1x32xf32, #tpu.memory_space<vmem>>, %arg6: memref<32x4xf32, #tpu.memory_space<vmem>>, %arg7: memref<1x4xf32, #tpu.memory_space<vmem>>, %arg8: memref<32x4xf32, #tpu.memory_space<vmem>>) attributes {dimension_semantics = [#tpu.dimension_semantics<parallel>], iteration_bounds = array<i64: 1>, scalar_prefetch = 0 : i64, scratch_operands = 0 : i64, tpu.core_type = #tpu.core_type<tc>, window_params = [{transform_indices = @transform_0, window_bounds = array<i64: 32, 16>}, {pipeline_mode = #tpu.pipeline_mode<synchronous>, transform_indices = @transform_1, window_bounds = array<i64: 16, 64>}, {pipeline_mode = #tpu.pipeline_mode<synchronous>, transform_indices = @transform_2, window_bounds = array<i64: 1, 64>}, {pipeline_mode = #tpu.pipeline_mode<synchronous>, transform_indices = @transform_3, window_bounds = array<i64: 64, 32>}, {pipeline_mode = #tpu.pipeline_mode<synchronous>, transform_indices = @transform_4, window_bounds = array<i64: 1, 32>}, {pipeline_mode = #tpu.pipeline_mode<synchronous>, transform_indices = @transform_5, window_bounds = array<i64: 32, 4>}, {pipeline_mode = #tpu.pipeline_mode<synchronous>, transform_indices = @transform_6, window_bounds = array<i64: 1, 4>}, {transform_indices = @transform_7, window_bounds = array<i64: 32, 4>}]} {
    %c0 = arith.constant 0 : index
    %c0_0 = arith.constant 0 : index
    %0 = vector.load %arg1[%c0, %c0_0] : memref<32x16xf32, #tpu.memory_space<vmem>>, vector<32x16xf32>
    %c0_1 = arith.constant 0 : index
    %c0_2 = arith.constant 0 : index
    %1 = vector.load %arg2[%c0_1, %c0_2] : memref<16x64xf32, #tpu.memory_space<vmem>>, vector<16x64xf32>
    %cst = arith.constant dense<0.000000e+00> : vector<32x64xf32>
    %2 = tpu.matmul %0, %1, %cst {dimension_numbers = #tpu.dot_dimension_numbers<[1], [0], [0], [1], [0, 0, 1, 1], [], []>, precision = #tpu.contract_precision<fp32>} : vector<32x16xf32>, vector<16x64xf32>, vector<32x64xf32> -> vector<32x64xf32>
    %c0_3 = arith.constant 0 : index
    %c0_4 = arith.constant 0 : index
    %3 = vector.load %arg3[%c0_3, %c0_4] : memref<1x64xf32, #tpu.memory_space<vmem>>, vector<1x64xf32>
    %4 = vector.broadcast %3 : vector<1x64xf32> to vector<32x64xf32>
    %5 = arith.addf %2, %4 : vector<32x64xf32>
    %cst_5 = arith.constant 0.000000e+00 : f32
    %6 = vector.broadcast %cst_5 : f32 to vector<32x64xf32>
    %7 = arith.maximumf %5, %6 : vector<32x64xf32>
    %c0_6 = arith.constant 0 : index
    %c0_7 = arith.constant 0 : index
    %8 = vector.load %arg4[%c0_6, %c0_7] : memref<64x32xf32, #tpu.memory_space<vmem>>, vector<64x32xf32>
    %cst_8 = arith.constant dense<0.000000e+00> : vector<32x32xf32>
    %9 = tpu.matmul %7, %8, %cst_8 {dimension_numbers = #tpu.dot_dimension_numbers<[1], [0], [0], [1], [0, 0, 1, 1], [], []>, precision = #tpu.contract_precision<fp32>} : vector<32x64xf32>, vector<64x32xf32>, vector<32x32xf32> -> vector<32x32xf32>
    %c0_9 = arith.constant 0 : index
    %c0_10 = arith.constant 0 : index
    %10 = vector.load %arg5[%c0_9, %c0_10] : memref<1x32xf32, #tpu.memory_space<vmem>>, vector<1x32xf32>
    %11 = vector.broadcast %10 : vector<1x32xf32> to vector<32x32xf32>
    %12 = arith.addf %9, %11 : vector<32x32xf32>
    %cst_11 = arith.constant 0.000000e+00 : f32
    %13 = vector.broadcast %cst_11 : f32 to vector<32x32xf32>
    %14 = arith.maximumf %12, %13 : vector<32x32xf32>
    %c0_12 = arith.constant 0 : index
    %c0_13 = arith.constant 0 : index
    %15 = vector.load %arg6[%c0_12, %c0_13] : memref<32x4xf32, #tpu.memory_space<vmem>>, vector<32x4xf32>
    %cst_14 = arith.constant dense<0.000000e+00> : vector<32x4xf32>
    %16 = tpu.matmul %14, %15, %cst_14 {dimension_numbers = #tpu.dot_dimension_numbers<[1], [0], [0], [1], [0, 0, 1, 1], [], []>, precision = #tpu.contract_precision<fp32>} : vector<32x32xf32>, vector<32x4xf32>, vector<32x4xf32> -> vector<32x4xf32>
    %c0_15 = arith.constant 0 : index
    %c0_16 = arith.constant 0 : index
    %17 = vector.load %arg7[%c0_15, %c0_16] : memref<1x4xf32, #tpu.memory_space<vmem>>, vector<1x4xf32>
    %18 = vector.broadcast %17 : vector<1x4xf32> to vector<32x4xf32>
    %19 = arith.addf %16, %18 : vector<32x4xf32>
    %c0_17 = arith.constant 0 : index
    %c0_18 = arith.constant 0 : index
    %20 = vector.load %arg8[%c0_17, %c0_18] : memref<32x4xf32, #tpu.memory_space<vmem>>, vector<32x4xf32>
    tpu.vector_store %arg8[%c0_17, %c0_18], %19 {strides = array<i32>} : memref<32x4xf32, #tpu.memory_space<vmem>>, vector<32x4xf32>,
    return
  }
  func.func @transform_0(%arg0: i32) -> (i32, i32) {
    %c0_i32 = arith.constant 0 : i32
    %c0_i32_0 = arith.constant 0 : i32
    return %arg0, %c0_i32 : i32, i32
  }
  func.func @transform_1(%arg0: i32) -> (i32, i32) {
    %c0_i32 = arith.constant 0 : i32
    %c0_i32_0 = arith.constant 0 : i32
    %c0_i32_1 = arith.constant 0 : i32
    return %c0_i32, %c0_i32_0 : i32, i32
  }
  func.func @transform_2(%arg0: i32) -> (i32, i32) {
    %c0_i32 = arith.constant 0 : i32
    %c0_i32_0 = arith.constant 0 : i32
    %c0_i32_1 = arith.constant 0 : i32
    return %c0_i32, %c0_i32_0 : i32, i32
  }
  func.func @transform_3(%arg0: i32) -> (i32, i32) {
    %c0_i32 = arith.constant 0 : i32
    %c0_i32_0 = arith.constant 0 : i32
    %c0_i32_1 = arith.constant 0 : i32
    return %c0_i32, %c0_i32_0 : i32, i32
  }
  func.func @transform_4(%arg0: i32) -> (i32, i32) {
    %c0_i32 = arith.constant 0 : i32
    %c0_i32_0 = arith.constant 0 : i32
    %c0_i32_1 = arith.constant 0 : i32
    return %c0_i32, %c0_i32_0 : i32, i32
  }
  func.func @transform_5(%arg0: i32) -> (i32, i32) {
    %c0_i32 = arith.constant 0 : i32
    %c0_i32_0 = arith.constant 0 : i32
    %c0_i32_1 = arith.constant 0 : i32
    return %c0_i32, %c0_i32_0 : i32, i32
  }
  func.func @transform_6(%arg0: i32) -> (i32, i32) {
    %c0_i32 = arith.constant 0 : i32
    %c0_i32_0 = arith.constant 0 : i32
    %c0_i32_1 = arith.constant 0 : i32
    return %c0_i32, %c0_i32_0 : i32, i32
  }
  func.func @transform_7(%arg0: i32) -> (i32, i32) {
    %c0_i32 = arith.constant 0 : i32
    %c0_i32_0 = arith.constant 0 : i32
    return %arg0, %c0_i32 : i32, i32
  }
}

</mosaic_0001>

<llo_original>
// kernel: _qnetwork_forward_impl.1
$region0: #{_qnetwork_forward_impl.1}
  #allocation0 [shape = 'u32[]', space=smem, size = 0x4, offset = 0x4, fixed_abs, tag = 'smem constant byte address 0x4 - core index']
  #allocation1 [shape = 'u32[144,128]{1,0:T(1,128)}', space=vmem, size = 0x12000, scoped, tag = 'internal scratch']
  %s0 = inlined_call_operand.vmem [shape: f32[32,16], index: 0, kind: input, shape index: {}]
  %s1 = inlined_call_operand.vmem [shape: f32[16,64], index: 1, kind: input, shape index: {}]
  %s2 = inlined_call_operand.vmem [shape: f32[1,64], index: 2, kind: input, shape index: {}]
  %s3 = inlined_call_operand.vmem [shape: f32[64,32], index: 3, kind: input, shape index: {}]
  %s4 = inlined_call_operand.vmem [shape: f32[1,32], index: 4, kind: input, shape index: {}]
  %s5 = inlined_call_operand.vmem [shape: f32[32,4], index: 5, kind: input, shape index: {}]
  %s6 = inlined_call_operand.vmem [shape: f32[1,4], index: 6, kind: input, shape index: {}]
  %s7 = inlined_call_operand.vmem [shape: f32[32,4], index: 7, kind: output, shape index: {}]
  %s8 = sld [smem:[#allocation0]]
  $region38: #{_qnetwork_forward_impl.1} parent=0
    _
  %s10 = ssub.s32 1, %s8
  %s11 = scalar_select 0, %s10, %s8
  // Predicated region
  $region2: #{_qnetwork_forward_impl.1} parent=0 // pred_check
    _
  $region3: #{_qnetwork_forward_impl.1} parent=0 // pred_check_branch
    %13 = sbr.rel (0) target = $region5
  $region4: #{_qnetwork_forward_impl.1} parent=0 // pred_region
    _
  $region5: #{_qnetwork_forward_impl.1} parent=0 // pred_fallthru
    _
  // Predicated region
  $region6: #{_qnetwork_forward_impl.1} parent=0 // pred_check
    _
  $region7: #{_qnetwork_forward_impl.1} parent=0 // pred_check_branch
    %15 = sbr.rel (0) target = $region9
  $region8: #{_qnetwork_forward_impl.1} parent=0 // pred_region
    _
  $region9: #{_qnetwork_forward_impl.1} parent=0 // pred_fallthru
    _
  // Predicated region
  $region10: #{_qnetwork_forward_impl.1} parent=0 // pred_check
    _
  $region11: #{_qnetwork_forward_impl.1} parent=0 // pred_check_branch
    %17 = sbr.rel (0) target = $region13
  $region12: #{_qnetwork_forward_impl.1} parent=0 // pred_region
    _
  $region13: #{_qnetwork_forward_impl.1} parent=0 // pred_fallthru
    _
  // Predicated region
  $region14: #{_qnetwork_forward_impl.1} parent=0 // pred_check
    _
  $region15: #{_qnetwork_forward_impl.1} parent=0 // pred_check_branch
    %19 = sbr.rel (0) target = $region17
  $region16: #{_qnetwork_forward_impl.1} parent=0 // pred_region
    _
  $region17: #{_qnetwork_forward_impl.1} parent=0 // pred_fallthru
    _
  // Predicated region
  $region18: #{_qnetwork_forward_impl.1} parent=0 // pred_check
    _
  $region19: #{_qnetwork_forward_impl.1} parent=0 // pred_check_branch
    %21 = sbr.rel (0) target = $region21
  $region20: #{_qnetwork_forward_impl.1} parent=0 // pred_region
    _
  $region21: #{_qnetwork_forward_impl.1} parent=0 // pred_fallthru
    _
  // Predicated region
  $region22: #{_qnetwork_forward_impl.1} parent=0 // pred_check
    _
  $region23: #{_qnetwork_forward_impl.1} parent=0 // pred_check_branch
    %23 = sbr.rel (0) target = $region25
  $region24: #{_qnetwork_forward_impl.1} parent=0 // pred_region
    _
  $region25: #{_qnetwork_forward_impl.1} parent=0 // pred_fallthru
    _
  // Predicated region
  $region26: #{_qnetwork_forward_impl.1} parent=0 // pred_check
    _
  $region27: #{_qnetwork_forward_impl.1} parent=0 // pred_check_branch
    %25 = sbr.rel (0) target = $region29
  $region28: #{_qnetwork_forward_impl.1} parent=0 // pred_region
    _
  $region29: #{_qnetwork_forward_impl.1} parent=0 // pred_fallthru
    _
  %v26 = vld [vmem:[%s0] sm:$0xff]
  %v27 = vld [vmem:[%s0 + $0x8] sm:$0xff]
  %v28 = vld [vmem:[%s0 + $0x10] sm:$0xff]
  %v29 = vld [vmem:[%s0 + $0x18] sm:$0xff]
  %v30 = vld [vmem:[%s1] sm:$0xff]
  %v31 = vld [vmem:[%s1 + $0x8] sm:$0xff]
  %v32 = vld [vmem:[%s2] sm:$0x1]
  %v34 = vlaneseq
  %v35 = vshrl.u32 %v34, 7
  %v36 = vsub.s32 0, %v35
  %v37 = vrot.slane %v32, %v36
  %vm39 = vcmask 130048
  %v41 = vsel %vm39, %v26, 0
  %v44 = vsel %vm39, %v27, 0
  %v47 = vsel %vm39, %v28, 0
  %v50 = vsel %vm39, %v29, 0
  %52 = vmatprep.subr.mxu0 0.0
  %v53 = vand.u32 %v30, 4294901760
  %54 = vmatpush1.msra.mxu0 %v53
  %55 = vmatprep.subr.mxu0 0.0
  %v56 = vand.u32 %v31, 4294901760
  %57 = vmatpush1.msra.mxu0 %v56
  %58 = vmatprep.subr.mxu0 0.0
  %59 = vmatpush1.msra.mxu0 0.0
  %60 = vmatprep.subr.mxu0 0.0
  %61 = vmatpush1.msra.mxu0 0.0
  %62 = vmatprep.subr.mxu0 0.0
  %63 = vmatpush1.msra.mxu0 0.0
  %64 = vmatprep.subr.mxu0 0.0
  %65 = vmatpush1.msra.mxu0 0.0
  %66 = vmatprep.subr.mxu0 0.0
  %67 = vmatpush1.msra.mxu0 0.0
  %68 = vmatprep.subr.mxu0 0.0
  %69 = vmatpush1.msra.mxu0 0.0
  %70 = vmatprep.subr.mxu0 0.0
  %71 = vmatpush1.msra.mxu0 0.0
  %72 = vmatprep.subr.mxu0 0.0
  %73 = vmatpush1.msra.mxu0 0.0
  %74 = vmatprep.subr.mxu0 0.0
  %75 = vmatpush1.msra.mxu0 0.0
  %76 = vmatprep.subr.mxu0 0.0
  %77 = vmatpush1.msra.mxu0 0.0
  %78 = vmatprep.subr.mxu0 0.0
  %79 = vmatpush1.msra.mxu0 0.0
  %80 = vmatprep.subr.mxu0 0.0
  %81 = vmatpush1.msra.mxu0 0.0
  %82 = vmatprep.subr.mxu0 0.0
  %83 = vmatpush1.msra.mxu0 0.0
  %84 = vmatprep.subr.mxu0 0.0
  %85 = vmatpush1.msra.mxu0 0.0
  %86 = vmatprep.subr.mxu0 0.0
  %87 = vmatpush1.msra.mxu0 0.0
  %88 = vmatprep.subr.mxu0 0.0
  %89 = vmatpush1.msra.mxu0 0.0
  %90 = vmatprep.subr.mxu0 0.0
  %91 = vmatpush1.msra.mxu0 0.0
  %92 = vmatprep.subr.mxu0 0.0
  %93 = vmatpush1.msra.mxu0 0.0
  %94 = vmatprep.subr.mxu0 0.0
  %95 = vmatpush1.msra.mxu0 0.0
  %96 = vmatprep.subr.mxu0 0.0
  %97 = vmatpush1.msra.mxu0 0.0
  %98 = vmatprep.subr.mxu0 0.0
  %99 = vmatpush1.msra.mxu0 0.0
  %100 = vmatprep.subr.mxu0 0.0
  %101 = vmatpush1.msra.mxu0 0.0
  %102 = vmatprep.subr.mxu0 0.0
  %103 = vmatpush1.msra.mxu0 0.0
  %104 = vmatprep.subr.mxu0 0.0
  %105 = vmatpush1.msra.mxu0 0.0
  %106 = vmatprep.subr.mxu0 0.0
  %107 = vmatpush1.msra.mxu0 0.0
  %108 = vmatprep.subr.mxu0 0.0
  %109 = vmatpush1.msra.mxu0 0.0
  %110 = vmatprep.subr.mxu0 0.0
  %111 = vmatpush1.msra.mxu0 0.0
  %112 = vmatprep.subr.mxu0 0.0
  %113 = vmatpush1.msra.mxu0 0.0
  %114 = vmatprep.subr.mxu0 0.0
  %115 = vmatpush1.msra.mxu0 0.0
  %116 = vmatprep.subr.mxu0 0.0
  %117 = vmatpush1.msra.mxu0 0.0
  %118 = vmatprep.mubr.f32.mxu0 0.0
  %v119 = vand.u32 %v41, 4294901760
  %v120 = vsub.f32 %v41, %v119
  %v121 = vand.u32 %v120, 4294901760
  %v122 = vsub.f32 %v120, %v121
  %v123 = vand.u32 %v122, 4294901760
  %124 = vmatmul.mubr.f32.gmra.mrb[0].mxu0 %v123
  %v125 = vpop.f32.mrb[0].mxu0
  %v126 = vadd.f32 %v37, %v125
  %v127 = vpop.f32.mrb[0].mxu0
  %128 = vmatprep.mubr.f32.mxu0 0.0
  %v129 = vand.u32 %v44, 4294901760
  %v130 = vsub.f32 %v44, %v129
  %v131 = vand.u32 %v130, 4294901760
  %v132 = vsub.f32 %v130, %v131
  %v133 = vand.u32 %v132, 4294901760
  %134 = vmatmul.mubr.f32.gmra.mrb[0].mxu0 %v133
  %v135 = vpop.f32.mrb[0].mxu0
  %v136 = vadd.f32 %v37, %v135
  %v137 = vpop.f32.mrb[0].mxu0
  %138 = vmatprep.mubr.f32.mxu0 0.0
  %v139 = vand.u32 %v47, 4294901760
  %v140 = vsub.f32 %v47, %v139
  %v141 = vand.u32 %v140, 4294901760
  %v142 = vsub.f32 %v140, %v141
  %v143 = vand.u32 %v142, 4294901760
  %144 = vmatmul.mubr.f32.gmra.mrb[0].mxu0 %v143
  %v145 = vpop.f32.mrb[0].mxu0
  %v146 = vadd.f32 %v37, %v145
  %v147 = vpop.f32.mrb[0].mxu0
  %148 = vmatprep.mubr.f32.mxu0 0.0
  %v149 = vand.u32 %v50, 4294901760
  %v150 = vsub.f32 %v50, %v149
  %v151 = vand.u32 %v150, 4294901760
  %v152 = vsub.f32 %v150, %v151
  %v153 = vand.u32 %v152, 4294901760
  %154 = vmatmul.mubr.f32.gmra.mrb[0].mxu0 %v153
  %v155 = vpop.f32.mrb[0].mxu0
  %v156 = vadd.f32 %v37, %v155
  %v157 = vpop.f32.mrb[0].mxu0
  %158 = vdwg.mxu0
  %159 = vmatprep.subr.mxu0 0.0
  %v160 = vand.u32 %v30, 4294901760
  %v161 = vsub.f32 %v30, %v160
  %v162 = vand.u32 %v161, 4294901760
  %v163 = vsub.f32 %v161, %v162
  %v164 = vand.u32 %v163, 4294901760
  %165 = vmatpush1.msra.mxu0 %v164
  %166 = vmatprep.subr.mxu0 0.0
  %v167 = vand.u32 %v31, 4294901760
  %v168 = vsub.f32 %v31, %v167
  %v169 = vand.u32 %v168, 4294901760
  %v170 = vsub.f32 %v168, %v169
  %v171 = vand.u32 %v170, 4294901760
  %172 = vmatpush1.msra.mxu0 %v171
  %173 = vmatprep.subr.mxu0 0.0
  %174 = vmatpush1.msra.mxu0 0.0
  %175 = vmatprep.subr.mxu0 0.0
  %176 = vmatpush1.msra.mxu0 0.0
  %177 = vmatprep.subr.mxu0 0.0
  %178 = vmatpush1.msra.mxu0 0.0
  %179 = vmatprep.subr.mxu0 0.0
  %180 = vmatpush1.msra.mxu0 0.0
  %181 = vmatprep.subr.mxu0 0.0
  %182 = vmatpush1.msra.mxu0 0.0
  %183 = vmatprep.subr.mxu0 0.0
  %184 = vmatpush1.msra.mxu0 0.0
  %185 = vmatprep.subr.mxu0 0.0
  %186 = vmatpush1.msra.mxu0 0.0
  %187 = vmatprep.subr.mxu0 0.0
  %188 = vmatpush1.msra.mxu0 0.0
  %189 = vmatprep.subr.mxu0 0.0
  %190 = vmatpush1.msra.mxu0 0.0
  %191 = vmatprep.subr.mxu0 0.0
  %192 = vmatpush1.msra.mxu0 0.0
  %193 = vmatprep.subr.mxu0 0.0
  %194 = vmatpush1.msra.mxu0 0.0
  %195 = vmatprep.subr.mxu0 0.0
  %196 = vmatpush1.msra.mxu0 0.0
  %197 = vmatprep.subr.mxu0 0.0
  %198 = vmatpush1.msra.mxu0 0.0
  %199 = vmatprep.subr.mxu0 0.0
  %200 = vmatpush1.msra.mxu0 0.0
  %201 = vmatprep.subr.mxu0 0.0
  %202 = vmatpush1.msra.mxu0 0.0
  %203 = vmatprep.subr.mxu0 0.0
  %204 = vmatpush1.msra.mxu0 0.0
  %205 = vmatprep.subr.mxu0 0.0
  %206 = vmatpush1.msra.mxu0 0.0
  %207 = vmatprep.subr.mxu0 0.0
  %208 = vmatpush1.msra.mxu0 0.0
  %209 = vmatprep.subr.mxu0 0.0
  %210 = vmatpush1.msra.mxu0 0.0
  %211 = vmatprep.subr.mxu0 0.0
  %212 = vmatpush1.msra.mxu0 0.0
  %213 = vmatprep.subr.mxu0 0.0
  %214 = vmatpush1.msra.mxu0 0.0
  %215 = vmatprep.subr.mxu0 0.0
  %216 = vmatpush1.msra.mxu0 0.0
  %217 = vmatprep.subr.mxu0 0.0
  %218 = vmatpush1.msra.mxu0 0.0
  %219 = vmatprep.subr.mxu0 0.0
  %220 = vmatpush1.msra.mxu0 0.0
  %221 = vmatprep.subr.mxu0 0.0
  %222 = vmatpush1.msra.mxu0 0.0
  %223 = vmatprep.subr.mxu0 0.0
  %224 = vmatpush1.msra.mxu0 0.0
  %225 = vmatprep.subr.mxu0 0.0
  %226 = vmatpush1.msra.mxu0 0.0
  %227 = vmatprep.subr.mxu0 0.0
  %228 = vmatpush1.msra.mxu0 0.0
  %229 = vmatprep.subr.mxu0 0.0
  %230 = vmatpush1.msra.mxu0 0.0
  %231 = vmatprep.subr.mxu0 0.0
  %232 = vmatpush1.msra.mxu0 0.0
  %233 = vmatprep.mubr.f32.mxu0 0.0
  %v234 = vand.u32 %v41, 4294901760
  %235 = vmatmul.mubr.f32.gmra.mrb[0].mxu0 %v234
  %v236 = vpop.f32.mrb[0].mxu0
  %v237 = vadd.f32 %v126, %v236
  %v238 = vpop.f32.mrb[0].mxu0
  %239 = vmatprep.mubr.f32.mxu0 0.0
  %v240 = vand.u32 %v44, 4294901760
  %241 = vmatmul.mubr.f32.gmra.mrb[0].mxu0 %v240
  %v242 = vpop.f32.mrb[0].mxu0
  %v243 = vadd.f32 %v136, %v242
  %v244 = vpop.f32.mrb[0].mxu0
  %245 = vmatprep.mubr.f32.mxu0 0.0
  %v246 = vand.u32 %v47, 4294901760
  %247 = vmatmul.mubr.f32.gmra.mrb[0].mxu0 %v246
  %v248 = vpop.f32.mrb[0].mxu0
  %v249 = vadd.f32 %v146, %v248
  %v250 = vpop.f32.mrb[0].mxu0
  %251 = vmatprep.mubr.f32.mxu0 0.0
  %v252 = vand.u32 %v50, 4294901760
  %253 = vmatmul.mubr.f32.gmra.mrb[0].mxu0 %v252
  %v254 = vpop.f32.mrb[0].mxu0
  %v255 = vadd.f32 %v156, %v254
  %v256 = vpop.f32.mrb[0].mxu0
  %257 = vdwg.mxu0
  %258 = vmatprep.subr.mxu0 0.0
  %v259 = vand.u32 %v30, 4294901760
  %v260 = vsub.f32 %v30, %v259
  %261 = vmatpush1.msra.mxu0 %v260
  %262 = vmatprep.subr.mxu0 0.0
  %v263 = vand.u32 %v31, 4294901760
  %v264 = vsub.f32 %v31, %v263
  %265 = vmatpush1.msra.mxu0 %v264
  %266 = vmatprep.subr.mxu0 0.0
  %267 = vmatpush1.msra.mxu0 0.0
  %268 = vmatprep.subr.mxu0 0.0
  %269 = vmatpush1.msra.mxu0 0.0
  %270 = vmatprep.subr.mxu0 0.0
  %271 = vmatpush1.msra.mxu0 0.0
  %272 = vmatprep.subr.mxu0 0.0
  %273 = vmatpush1.msra.mxu0 0.0
  %274 = vmatprep.subr.mxu0 0.0
  %275 = vmatpush1.msra.mxu0 0.0
  %276 = vmatprep.subr.mxu0 0.0
  %277 = vmatpush1.msra.mxu0 0.0
  %278 = vmatprep.subr.mxu0 0.0
  %279 = vmatpush1.msra.mxu0 0.0
  %280 = vmatprep.subr.mxu0 0.0
  %281 = vmatpush1.msra.mxu0 0.0
  %282 = vmatprep.subr.mxu0 0.0
  %283 = vmatpush1.msra.mxu0 0.0
  %284 = vmatprep.subr.mxu0 0.0
  %285 = vmatpush1.msra.mxu0 0.0
  %286 = vmatprep.subr.mxu0 0.0
  %287 = vmatpush1.msra.mxu0 0.0
  %288 = vmatprep.subr.mxu0 0.0
  %289 = vmatpush1.msra.mxu0 0.0
  %290 = vmatprep.subr.mxu0 0.0
  %291 = vmatpush1.msra.mxu0 0.0
  %292 = vmatprep.subr.mxu0 0.0
  %293 = vmatpush1.msra.mxu0 0.0
  %294 = vmatprep.subr.mxu0 0.0
  %295 = vmatpush1.msra.mxu0 0.0
  %296 = vmatprep.subr.mxu0 0.0
  %297 = vmatpush1.msra.mxu0 0.0
  %298 = vmatprep.subr.mxu0 0.0
  %299 = vmatpush1.msra.mxu0 0.0
  %300 = vmatprep.subr.mxu0 0.0
  %301 = vmatpush1.msra.mxu0 0.0
  %302 = vmatprep.subr.mxu0 0.0
  %303 = vmatpush1.msra.mxu0 0.0
  %304 = vmatprep.subr.mxu0 0.0
  %305 = vmatpush1.msra.mxu0 0.0
  %306 = vmatprep.subr.mxu0 0.0
  %307 = vmatpush1.msra.mxu0 0.0
  %308 = vmatprep.subr.mxu0 0.0
  %309 = vmatpush1.msra.mxu0 0.0
  %310 = vmatprep.subr.mxu0 0.0
  %311 = vmatpush1.msra.mxu0 0.0
  %312 = vmatprep.subr.mxu0 0.0
  %313 = vmatpush1.msra.mxu0 0.0
  %314 = vmatprep.subr.mxu0 0.0
  %315 = vmatpush1.msra.mxu0 0.0
  %316 = vmatprep.subr.mxu0 0.0
  %317 = vmatpush1.msra.mxu0 0.0
  %318 = vmatprep.subr.mxu0 0.0
  %319 = vmatpush1.msra.mxu0 0.0
  %320 = vmatprep.subr.mxu0 0.0
  %321 = vmatpush1.msra.mxu0 0.0
  %322 = vmatprep.subr.mxu0 0.0
  %323 = vmatpush1.msra.mxu0 0.0
  %324 = vmatprep.subr.mxu0 0.0
  %325 = vmatpush1.msra.mxu0 0.0
  %326 = vmatprep.mubr.f32.mxu0 0.0
  %v327 = vand.u32 %v41, 4294901760
  %v328 = vsub.f32 %v41, %v327
  %329 = vmatmul.mubr.f32.gmra.mrb[0].mxu0 %v328
  %v330 = vpop.f32.mrb[0].mxu0
  %v331 = vadd.f32 %v237, %v330
  %v332 = vpop.f32.mrb[0].mxu0
  %333 = vmatprep.mubr.f32.mxu0 0.0
  %v334 = vand.u32 %v44, 4294901760
  %v335 = vsub.f32 %v44, %v334
  %336 = vmatmul.mubr.f32.gmra.mrb[0].mxu0 %v335
  %v337 = vpop.f32.mrb[0].mxu0
  %v338 = vadd.f32 %v243, %v337
  %v339 = vpop.f32.mrb[0].mxu0
  %340 = vmatprep.mubr.f32.mxu0 0.0
  %v341 = vand.u32 %v47, 4294901760
  %v342 = vsub.f32 %v47, %v341
  %343 = vmatmul.mubr.f32.gmra.mrb[0].mxu0 %v342
  %v344 = vpop.f32.mrb[0].mxu0
  %v345 = vadd.f32 %v249, %v344
  %v346 = vpop.f32.mrb[0].mxu0
  %347 = vmatprep.mubr.f32.mxu0 0.0
  %v348 = vand.u32 %v50, 4294901760
  %v349 = vsub.f32 %v50, %v348
  %350 = vmatmul.mubr.f32.gmra.mrb[0].mxu0 %v349
  %v351 = vpop.f32.mrb[0].mxu0
  %v352 = vadd.f32 %v255, %v351
  %v353 = vpop.f32.mrb[0].mxu0
  %354 = vdwg.mxu0
  %355 = vmatprep.subr.mxu0 0.0
  %v356 = vand.u32 %v30, 4294901760
  %357 = vmatpush1.msra.mxu0 %v356
  %358 = vmatprep.subr.mxu0 0.0
  %v359 = vand.u32 %v31, 4294901760
  %360 = vmatpush1.msra.mxu0 %v359
  %361 = vmatprep.subr.mxu0 0.0
  %362 = vmatpush1.msra.mxu0 0.0
  %363 = vmatprep.subr.mxu0 0.0
  %364 = vmatpush1.msra.mxu0 0.0
  %365 = vmatprep.subr.mxu0 0.0
  %366 = vmatpush1.msra.mxu0 0.0
  %367 = vmatprep.subr.mxu0 0.0
  %368 = vmatpush1.msra.mxu0 0.0
  %369 = vmatprep.subr.mxu0 0.0
  %370 = vmatpush1.msra.mxu0 0.0
  %371 = vmatprep.subr.mxu0 0.0
  %372 = vmatpush1.msra.mxu0 0.0
  %373 = vmatprep.subr.mxu0 0.0
  %374 = vmatpush1.msra.mxu0 0.0
  %375 = vmatprep.subr.mxu0 0.0
  %376 = vmatpush1.msra.mxu0 0.0
  %377 = vmatprep.subr.mxu0 0.0
  %378 = vmatpush1.msra.mxu0 0.0
  %379 = vmatprep.subr.mxu0 0.0
  %380 = vmatpush1.msra.mxu0 0.0
  %381 = vmatprep.subr.mxu0 0.0
  %382 = vmatpush1.msra.mxu0 0.0
  %383 = vmatprep.subr.mxu0 0.0
  %384 = vmatpush1.msra.mxu0 0.0
  %385 = vmatprep.subr.mxu0 0.0
  %386 = vmatpush1.msra.mxu0 0.0
  %387 = vmatprep.subr.mxu0 0.0
  %388 = vmatpush1.msra.mxu0 0.0
  %389 = vmatprep.subr.mxu0 0.0
  %390 = vmatpush1.msra.mxu0 0.0
  %391 = vmatprep.subr.mxu0 0.0
  %392 = vmatpush1.msra.mxu0 0.0
  %393 = vmatprep.subr.mxu0 0.0
  %394 = vmatpush1.msra.mxu0 0.0
  %395 = vmatprep.subr.mxu0 0.0
  %396 = vmatpush1.msra.mxu0 0.0
  %397 = vmatprep.subr.mxu0 0.0
  %398 = vmatpush1.msra.mxu0 0.0
  %399 = vmatprep.subr.mxu0 0.0
  %400 = vmatpush1.msra.mxu0 0.0
  %401 = vmatprep.subr.mxu0 0.0
  %402 = vmatpush1.msra.mxu0 0.0
  %403 = vmatprep.subr.mxu0 0.0
  %404 = vmatpush1.msra.mxu0 0.0
  %405 = vmatprep.subr.mxu0 0.0
  %406 = vmatpush1.msra.mxu0 0.0
  %407 = vmatprep.subr.mxu0 0.0
  %408 = vmatpush1.msra.mxu0 0.0
  %409 = vmatprep.subr.mxu0 0.0
  %410 = vmatpush1.msra.mxu0 0.0
  %411 = vmatprep.subr.mxu0 0.0
  %412 = vmatpush1.msra.mxu0 0.0
  %413 = vmatprep.subr.mxu0 0.0
  %414 = vmatpush1.msra.mxu0 0.0
  %415 = vmatprep.subr.mxu0 0.0
  %416 = vmatpush1.msra.mxu0 0.0
  %417 = vmatprep.subr.mxu0 0.0
  %418 = vmatpush1.msra.mxu0 0.0
  %419 = vmatprep.subr.mxu0 0.0
  %420 = vmatpush1.msra.mxu0 0.0
  %421 = vmatprep.mubr.f32.mxu0 0.0
  %v422 = vand.u32 %v41, 4294901760
  %v423 = vsub.f32 %v41, %v422
  %v424 = vand.u32 %v423, 4294901760
  %425 = vmatmul.mubr.f32.gmra.mrb[0].mxu0 %v424
  %v426 = vpop.f32.mrb[0].mxu0
  %v427 = vadd.f32 %v331, %v426
  %v428 = vpop.f32.mrb[0].mxu0
  %429 = vmatprep.mubr.f32.mxu0 0.0
  %v430 = vand.u32 %v44, 4294901760
  %v431 = vsub.f32 %v44, %v430
  %v432 = vand.u32 %v431, 4294901760
  %433 = vmatmul.mubr.f32.gmra.mrb[0].mxu0 %v432
  %v434 = vpop.f32.mrb[0].mxu0
  %v435 = vadd.f32 %v338, %v434
  %v436 = vpop.f32.mrb[0].mxu0
  %437 = vmatprep.mubr.f32.mxu0 0.0
  %v438 = vand.u32 %v47, 4294901760
  %v439 = vsub.f32 %v47, %v438
  %v440 = vand.u32 %v439, 4294901760
  %441 = vmatmul.mubr.f32.gmra.mrb[0].mxu0 %v440
  %v442 = vpop.f32.mrb[0].mxu0
  %v443 = vadd.f32 %v345, %v442
  %v444 = vpop.f32.mrb[0].mxu0
  %445 = vmatprep.mubr.f32.mxu0 0.0
  %v446 = vand.u32 %v50, 4294901760
  %v447 = vsub.f32 %v50, %v446
  %v448 = vand.u32 %v447, 4294901760
  %449 = vmatmul.mubr.f32.gmra.mrb[0].mxu0 %v448
  %v450 = vpop.f32.mrb[0].mxu0
  %v451 = vadd.f32 %v352, %v450
  %v452 = vpop.f32.mrb[0].mxu0
  %453 = vdwg.mxu0
  %454 = vmatprep.subr.mxu0 0.0
  %v455 = vand.u32 %v30, 4294901760
  %v456 = vsub.f32 %v30, %v455
  %v457 = vand.u32 %v456, 4294901760
  %458 = vmatpush1.msra.mxu0 %v457
  %459 = vmatprep.subr.mxu0 0.0
  %v460 = vand.u32 %v31, 4294901760
  %v461 = vsub.f32 %v31, %v460
  %v462 = vand.u32 %v461, 4294901760
  %463 = vmatpush1.msra.mxu0 %v462
  %464 = vmatprep.subr.mxu0 0.0
  %465 = vmatpush1.msra.mxu0 0.0
  %466 = vmatprep.subr.mxu0 0.0
  %467 = vmatpush1.msra.mxu0 0.0
  %468 = vmatprep.subr.mxu0 0.0
  %469 = vmatpush1.msra.mxu0 0.0
  %470 = vmatprep.subr.mxu0 0.0
  %471 = vmatpush1.msra.mxu0 0.0
  %472 = vmatprep.subr.mxu0 0.0
  %473 = vmatpush1.msra.mxu0 0.0
  %474 = vmatprep.subr.mxu0 0.0
  %475 = vmatpush1.msra.mxu0 0.0
  %476 = vmatprep.subr.mxu0 0.0
  %477 = vmatpush1.msra.mxu0 0.0
  %478 = vmatprep.subr.mxu0 0.0
  %479 = vmatpush1.msra.mxu0 0.0
  %480 = vmatprep.subr.mxu0 0.0
  %481 = vmatpush1.msra.mxu0 0.0
  %482 = vmatprep.subr.mxu0 0.0
  %483 = vmatpush1.msra.mxu0 0.0
  %484 = vmatprep.subr.mxu0 0.0
  %485 = vmatpush1.msra.mxu0 0.0
  %486 = vmatprep.subr.mxu0 0.0
  %487 = vmatpush1.msra.mxu0 0.0
  %488 = vmatprep.subr.mxu0 0.0
  %489 = vmatpush1.msra.mxu0 0.0
  %490 = vmatprep.subr.mxu0 0.0
  %491 = vmatpush1.msra.mxu0 0.0
  %492 = vmatprep.subr.mxu0 0.0
  %493 = vmatpush1.msra.mxu0 0.0
  %494 = vmatprep.subr.mxu0 0.0
  %495 = vmatpush1.msra.mxu0 0.0
  %496 = vmatprep.subr.mxu0 0.0
  %497 = vmatpush1.msra.mxu0 0.0
  %498 = vmatprep.subr.mxu0 0.0
  %499 = vmatpush1.msra.mxu0 0.0
  %500 = vmatprep.subr.mxu0 0.0
  %501 = vmatpush1.msra.mxu0 0.0
  %502 = vmatprep.subr.mxu0 0.0
  %503 = vmatpush1.msra.mxu0 0.0
  %504 = vmatprep.subr.mxu0 0.0
  %505 = vmatpush1.msra.mxu0 0.0
  %506 = vmatprep.subr.mxu0 0.0
  %507 = vmatpush1.msra.mxu0 0.0
  %508 = vmatprep.subr.mxu0 0.0
  %509 = vmatpush1.msra.mxu0 0.0
  %510 = vmatprep.subr.mxu0 0.0
  %511 = vmatpush1.msra.mxu0 0.0
  %512 = vmatprep.subr.mxu0 0.0
  %513 = vmatpush1.msra.mxu0 0.0
  %514 = vmatprep.subr.mxu0 0.0
  %515 = vmatpush1.msra.mxu0 0.0
  %516 = vmatprep.subr.mxu0 0.0
  %517 = vmatpush1.msra.mxu0 0.0
  %518 = vmatprep.subr.mxu0 0.0
  %519 = vmatpush1.msra.mxu0 0.0
  %520 = vmatprep.subr.mxu0 0.0
  %521 = vmatpush1.msra.mxu0 0.0
  %522 = vmatprep.subr.mxu0 0.0
  %523 = vmatpush1.msra.mxu0 0.0
  %524 = vmatprep.mubr.f32.mxu0 0.0
  %v525 = vand.u32 %v41, 4294901760
  %526 = vmatmul.mubr.f32.gmra.mrb[0].mxu0 %v525
  %v527 = vpop.f32.mrb[0].mxu0
  %v528 = vadd.f32 %v427, %v527
  %v529 = vpop.f32.mrb[0].mxu0
  %530 = vmatprep.mubr.f32.mxu0 0.0
  %v531 = vand.u32 %v44, 4294901760
  %532 = vmatmul.mubr.f32.gmra.mrb[0].mxu0 %v531
  %v533 = vpop.f32.mrb[0].mxu0
  %v534 = vadd.f32 %v435, %v533
  %v535 = vpop.f32.mrb[0].mxu0
  %536 = vmatprep.mubr.f32.mxu0 0.0
  %v537 = vand.u32 %v47, 4294901760
  %538 = vmatmul.mubr.f32.gmra.mrb[0].mxu0 %v537
  %v539 = vpop.f32.mrb[0].mxu0
  %v540 = vadd.f32 %v443, %v539
  %v541 = vpop.f32.mrb[0].mxu0
  %542 = vmatprep.mubr.f32.mxu0 0.0
  %v543 = vand.u32 %v50, 4294901760
  %544 = vmatmul.mubr.f32.gmra.mrb[0].mxu0 %v543
  %v545 = vpop.f32.mrb[0].mxu0
  %v546 = vadd.f32 %v451, %v545
  %v547 = vpop.f32.mrb[0].mxu0
  %548 = vdwg.mxu0
  %549 = vmatprep.subr.mxu0 0.0
  %v550 = vand.u32 %v30, 4294901760
  %551 = vmatpush1.msra.mxu0 %v550
  %552 = vmatprep.subr.mxu0 0.0
  %v553 = vand.u32 %v31, 4294901760
  %554 = vmatpush1.msra.mxu0 %v553
  %555 = vmatprep.subr.mxu0 0.0
  %556 = vmatpush1.msra.mxu0 0.0
  %557 = vmatprep.subr.mxu0 0.0
  %558 = vmatpush1.msra.mxu0 0.0
  %559 = vmatprep.subr.mxu0 0.0
  %560 = vmatpush1.msra.mxu0 0.0
  %561 = vmatprep.subr.mxu0 0.0
  %562 = vmatpush1.msra.mxu0 0.0
  %563 = vmatprep.subr.mxu0 0.0
  %564 = vmatpush1.msra.mxu0 0.0
  %565 = vmatprep.subr.mxu0 0.0
  %566 = vmatpush1.msra.mxu0 0.0
  %567 = vmatprep.subr.mxu0 0.0
  %568 = vmatpush1.msra.mxu0 0.0
  %569 = vmatprep.subr.mxu0 0.0
  %570 = vmatpush1.msra.mxu0 0.0
  %571 = vmatprep.subr.mxu0 0.0
  %572 = vmatpush1.msra.mxu0 0.0
  %573 = vmatprep.subr.mxu0 0.0
  %574 = vmatpush1.msra.mxu0 0.0
  %575 = vmatprep.subr.mxu0 0.0
  %576 = vmatpush1.msra.mxu0 0.0
  %577 = vmatprep.subr.mxu0 0.0
  %578 = vmatpush1.msra.mxu0 0.0
  %579 = vmatprep.subr.mxu0 0.0
  %580 = vmatpush1.msra.mxu0 0.0
  %581 = vmatprep.subr.mxu0 0.0
  %582 = vmatpush1.msra.mxu0 0.0
  %583 = vmatprep.subr.mxu0 0.0
  %584 = vmatpush1.msra.mxu0 0.0
  %585 = vmatprep.subr.mxu0 0.0
  %586 = vmatpush1.msra.mxu0 0.0
  %587 = vmatprep.subr.mxu0 0.0
  %588 = vmatpush1.msra.mxu0 0.0
  %589 = vmatprep.subr.mxu0 0.0
  %590 = vmatpush1.msra.mxu0 0.0
  %591 = vmatprep.subr.mxu0 0.0
  %592 = vmatpush1.msra.mxu0 0.0
  %593 = vmatprep.subr.mxu0 0.0
  %594 = vmatpush1.msra.mxu0 0.0
  %595 = vmatprep.subr.mxu0 0.0
  %596 = vmatpush1.msra.mxu0 0.0
  %597 = vmatprep.subr.mxu0 0.0
  %598 = vmatpush1.msra.mxu0 0.0
  %599 = vmatprep.subr.mxu0 0.0
  %600 = vmatpush1.msra.mxu0 0.0
  %601 = vmatprep.subr.mxu0 0.0
  %602 = vmatpush1.msra.mxu0 0.0
  %603 = vmatprep.subr.mxu0 0.0
  %604 = vmatpush1.msra.mxu0 0.0
  %605 = vmatprep.subr.mxu0 0.0
  %606 = vmatpush1.msra.mxu0 0.0
  %607 = vmatprep.subr.mxu0 0.0
  %608 = vmatpush1.msra.mxu0 0.0
  %609 = vmatprep.subr.mxu0 0.0
  %610 = vmatpush1.msra.mxu0 0.0
  %611 = vmatprep.subr.mxu0 0.0
  %612 = vmatpush1.msra.mxu0 0.0
  %613 = vmatprep.subr.mxu0 0.0
  %614 = vmatpush1.msra.mxu0 0.0
  %615 = vmatprep.mubr.f32.mxu0 0.0
  %v616 = vand.u32 %v41, 4294901760
  %617 = vmatmul.mubr.f32.gmra.mrb[0].mxu0 %v616
  %v618 = vpop.f32.mrb[0].mxu0
  %v619 = vadd.f32 %v528, %v618
  %v620 = vpop.f32.mrb[0].mxu0
  %621 = vmatprep.mubr.f32.mxu0 0.0
  %v622 = vand.u32 %v44, 4294901760
  %623 = vmatmul.mubr.f32.gmra.mrb[0].mxu0 %v622
  %v624 = vpop.f32.mrb[0].mxu0
  %v625 = vadd.f32 %v534, %v624
  %v626 = vpop.f32.mrb[0].mxu0
  %627 = vmatprep.mubr.f32.mxu0 0.0
  %v628 = vand.u32 %v47, 4294901760
  %629 = vmatmul.mubr.f32.gmra.mrb[0].mxu0 %v628
  %v630 = vpop.f32.mrb[0].mxu0
  %v631 = vadd.f32 %v540, %v630
  %v632 = vpop.f32.mrb[0].mxu0
  %633 = vmatprep.mubr.f32.mxu0 0.0
  %v634 = vand.u32 %v50, 4294901760
  %635 = vmatmul.mubr.f32.gmra.mrb[0].mxu0 %v634
  %v636 = vpop.f32.mrb[0].mxu0
  %v637 = vadd.f32 %v546, %v636
  %v638 = vpop.f32.mrb[0].mxu0
  %639 = vdwg.mxu0
  %v640 = vmax.f32 %v619, 0.0
  %v641 = vmax.f32 %v625, 0.0
  %v642 = vmax.f32 %v631, 0.0
  %v643 = vmax.f32 %v637, 0.0
  %v644 = vld [vmem:[%s3] sm:$0xff]
  %v645 = vld [vmem:[%s3 + $0x8] sm:$0xff]
  %v646 = vld [vmem:[%s3 + $0x10] sm:$0xff]
  %v647 = vld [vmem:[%s3 + $0x18] sm:$0xff]
  %v648 = vld [vmem:[%s3 + $0x20] sm:$0xff]
  %v649 = vld [vmem:[%s3 + $0x28] sm:$0xff]
  %v650 = vld [vmem:[%s3 + $0x30] sm:$0xff]
  %v651 = vld [vmem:[%s3 + $0x38] sm:$0xff]
  %v652 = vld [vmem:[%s4] sm:$0x1]
  %v654 = vlaneseq
  %v655 = vshrl.u32 %v654, 7
  %v656 = vsub.s32 0, %v655
  %v657 = vrot.slane %v652, %v656
  %vm659 = vcmask 523264
  %v661 = vsel %vm659, %v640, 0
  %v664 = vsel %vm659, %v641, 0
  %v667 = vsel %vm659, %v642, 0
  %v670 = vsel %vm659, %v643, 0
  %672 = vmatprep.subr.mxu0 0.0
  %v673 = vand.u32 %v644, 4294901760
  %674 = vmatpush1.msra.mxu0 %v673
  %675 = vmatprep.subr.mxu0 0.0
  %v676 = vand.u32 %v645, 4294901760
  %677 = vmatpush1.msra.mxu0 %v676
  %678 = vmatprep.subr.mxu0 0.0
  %v679 = vand.u32 %v646, 4294901760
  %680 = vmatpush1.msra.mxu0 %v679
  %681 = vmatprep.subr.mxu0 0.0
  %v682 = vand.u32 %v647, 4294901760
  %683 = vmatpush1.msra.mxu0 %v682
  %684 = vmatprep.subr.mxu0 0.0
  %v685 = vand.u32 %v648, 4294901760
  %686 = vmatpush1.msra.mxu0 %v685
  %687 = vmatprep.subr.mxu0 0.0
  %v688 = vand.u32 %v649, 4294901760
  %689 = vmatpush1.msra.mxu0 %v688
  %690 = vmatprep.subr.mxu0 0.0
  %v691 = vand.u32 %v650, 4294901760
  %692 = vmatpush1.msra.mxu0 %v691
  %693 = vmatprep.subr.mxu0 0.0
  %v694 = vand.u32 %v651, 4294901760
  %695 = vmatpush1.msra.mxu0 %v694
  %696 = vmatprep.subr.mxu0 0.0
  %697 = vmatpush1.msra.mxu0 0.0
  %698 = vmatprep.subr.mxu0 0.0
  %699 = vmatpush1.msra.mxu0 0.0
  %700 = vmatprep.subr.mxu0 0.0
  %701 = vmatpush1.msra.mxu0 0.0
  %702 = vmatprep.subr.mxu0 0.0
  %703 = vmatpush1.msra.mxu0 0.0
  %704 = vmatprep.subr.mxu0 0.0
  %705 = vmatpush1.msra.mxu0 0.0
  %706 = vmatprep.subr.mxu0 0.0
  %707 = vmatpush1.msra.mxu0 0.0
  %708 = vmatprep.subr.mxu0 0.0
  %709 = vmatpush1.msra.mxu0 0.0
  %710 = vmatprep.subr.mxu0 0.0
  %711 = vmatpush1.msra.mxu0 0.0
  %712 = vmatprep.subr.mxu0 0.0
  %713 = vmatpush1.msra.mxu0 0.0
  %714 = vmatprep.subr.mxu0 0.0
  %715 = vmatpush1.msra.mxu0 0.0
  %716 = vmatprep.subr.mxu0 0.0
  %717 = vmatpush1.msra.mxu0 0.0
  %718 = vmatprep.subr.mxu0 0.0
  %719 = vmatpush1.msra.mxu0 0.0
  %720 = vmatprep.subr.mxu0 0.0
  %721 = vmatpush1.msra.mxu0 0.0
  %722 = vmatprep.subr.mxu0 0.0
  %723 = vmatpush1.msra.mxu0 0.0
  %724 = vmatprep.subr.mxu0 0.0
  %725 = vmatpush1.msra.mxu0 0.0
  %726 = vmatprep.subr.mxu0 0.0
  %727 = vmatpush1.msra.mxu0 0.0
  %728 = vmatprep.subr.mxu0 0.0
  %729 = vmatpush1.msra.mxu0 0.0
  %730 = vmatprep.subr.mxu0 0.0
  %731 = vmatpush1.msra.mxu0 0.0
  %732 = vmatprep.subr.mxu0 0.0
  %733 = vmatpush1.msra.mxu0 0.0
  %734 = vmatprep.subr.mxu0 0.0
  %735 = vmatpush1.msra.mxu0 0.0
  %736 = vmatprep.subr.mxu0 0.0
  %737 = vmatpush1.msra.mxu0 0.0
  %738 = vmatprep.subr.mxu0 0.0
  %739 = vmatpush1.msra.mxu0 0.0
  %740 = vmatprep.subr.mxu0 0.0
  %741 = vmatpush1.msra.mxu0 0.0
  %742 = vmatprep.subr.mxu0 0.0
  %743 = vmatpush1.msra.mxu0 0.0
  %744 = vmatprep.mubr.f32.mxu0 0.0
  %v745 = vand.u32 %v661, 4294901760
  %v746 = vsub.f32 %v661, %v745
  %v747 = vand.u32 %v746, 4294901760
  %v748 = vsub.f32 %v746, %v747
  %v749 = vand.u32 %v748, 4294901760
  %750 = vmatmul.mubr.f32.gmra.mrb[0].mxu0 %v749
  %v751 = vpop.f32.mrb[0].mxu0
  %v752 = vadd.f32 %v657, %v751
  %v753 = vpop.f32.mrb[0].mxu0
  %754 = vmatprep.mubr.f32.mxu0 0.0
  %v755 = vand.u32 %v664, 4294901760
  %v756 = vsub.f32 %v664, %v755
  %v757 = vand.u32 %v756, 4294901760
  %v758 = vsub.f32 %v756, %v757
  %v759 = vand.u32 %v758, 4294901760
  %760 = vmatmul.mubr.f32.gmra.mrb[0].mxu0 %v759
  %v761 = vpop.f32.mrb[0].mxu0
  %v762 = vadd.f32 %v657, %v761
  %v763 = vpop.f32.mrb[0].mxu0
  %764 = vmatprep.mubr.f32.mxu0 0.0
  %v765 = vand.u32 %v667, 4294901760
  %v766 = vsub.f32 %v667, %v765
  %v767 = vand.u32 %v766, 4294901760
  %v768 = vsub.f32 %v766, %v767
  %v769 = vand.u32 %v768, 4294901760
  %770 = vmatmul.mubr.f32.gmra.mrb[0].mxu0 %v769
  %v771 = vpop.f32.mrb[0].mxu0
  %v772 = vadd.f32 %v657, %v771
  %v773 = vpop.f32.mrb[0].mxu0
  %774 = vmatprep.mubr.f32.mxu0 0.0
  %v775 = vand.u32 %v670, 4294901760
  %v776 = vsub.f32 %v670, %v775
  %v777 = vand.u32 %v776, 4294901760
  %v778 = vsub.f32 %v776, %v777
  %v779 = vand.u32 %v778, 4294901760
  %780 = vmatmul.mubr.f32.gmra.mrb[0].mxu0 %v779
  %v781 = vpop.f32.mrb[0].mxu0
  %v782 = vadd.f32 %v657, %v781
  %v783 = vpop.f32.mrb[0].mxu0
  %784 = vdwg.mxu0
  %785 = vmatprep.subr.mxu0 0.0
  %v786 = vand.u32 %v644, 4294901760
  %v787 = vsub.f32 %v644, %v786
  %v788 = vand.u32 %v787, 4294901760
  %v789 = vsub.f32 %v787, %v788
  %v790 = vand.u32 %v789, 4294901760
  %791 = vmatpush1.msra.mxu0 %v790
  %792 = vmatprep.subr.mxu0 0.0
  %v793 = vand.u32 %v645, 4294901760
  %v794 = vsub.f32 %v645, %v793
  %v795 = vand.u32 %v794, 4294901760
  %v796 = vsub.f32 %v794, %v795
  %v797 = vand.u32 %v796, 4294901760
  %798 = vmatpush1.msra.mxu0 %v797
  %799 = vmatprep.subr.mxu0 0.0
  %v800 = vand.u32 %v646, 4294901760
  %v801 = vsub.f32 %v646, %v800
  %v802 = vand.u32 %v801, 4294901760
  %v803 = vsub.f32 %v801, %v802
  %v804 = vand.u32 %v803, 4294901760
  %805 = vmatpush1.msra.mxu0 %v804
  %806 = vmatprep.subr.mxu0 0.0
  %v807 = vand.u32 %v647, 4294901760
  %v808 = vsub.f32 %v647, %v807
  %v809 = vand.u32 %v808, 4294901760
  %v810 = vsub.f32 %v808, %v809
  %v811 = vand.u32 %v810, 4294901760
  %812 = vmatpush1.msra.mxu0 %v811
  %813 = vmatprep.subr.mxu0 0.0
  %v814 = vand.u32 %v648, 4294901760
  %v815 = vsub.f32 %v648, %v814
  %v816 = vand.u32 %v815, 4294901760
  %v817 = vsub.f32 %v815, %v816
  %v818 = vand.u32 %v817, 4294901760
  %819 = vmatpush1.msra.mxu0 %v818
  %820 = vmatprep.subr.mxu0 0.0
  %v821 = vand.u32 %v649, 4294901760
  %v822 = vsub.f32 %v649, %v821
  %v823 = vand.u32 %v822, 4294901760
  %v824 = vsub.f32 %v822, %v823
  %v825 = vand.u32 %v824, 4294901760
  %826 = vmatpush1.msra.mxu0 %v825
  %827 = vmatprep.subr.mxu0 0.0
  %v828 = vand.u32 %v650, 4294901760
  %v829 = vsub.f32 %v650, %v828
  %v830 = vand.u32 %v829, 4294901760
  %v831 = vsub.f32 %v829, %v830
  %v832 = vand.u32 %v831, 4294901760
  %833 = vmatpush1.msra.mxu0 %v832
  %834 = vmatprep.subr.mxu0 0.0
  %v835 = vand.u32 %v651, 4294901760
  %v836 = vsub.f32 %v651, %v835
  %v837 = vand.u32 %v836, 4294901760
  %v838 = vsub.f32 %v836, %v837
  %v839 = vand.u32 %v838, 4294901760
  %840 = vmatpush1.msra.mxu0 %v839
  %841 = vmatprep.subr.mxu0 0.0
  %842 = vmatpush1.msra.mxu0 0.0
  %843 = vmatprep.subr.mxu0 0.0
  %844 = vmatpush1.msra.mxu0 0.0
  %845 = vmatprep.subr.mxu0 0.0
  %846 = vmatpush1.msra.mxu0 0.0
  %847 = vmatprep.subr.mxu0 0.0
  %848 = vmatpush1.msra.mxu0 0.0
  %849 = vmatprep.subr.mxu0 0.0
  %850 = vmatpush1.msra.mxu0 0.0
  %851 = vmatprep.subr.mxu0 0.0
  %852 = vmatpush1.msra.mxu0 0.0
  %853 = vmatprep.subr.mxu0 0.0
  %854 = vmatpush1.msra.mxu0 0.0
  %855 = vmatprep.subr.mxu0 0.0
  %856 = vmatpush1.msra.mxu0 0.0
  %857 = vmatprep.subr.mxu0 0.0
  %858 = vmatpush1.msra.mxu0 0.0
  %859 = vmatprep.subr.mxu0 0.0
  %860 = vmatpush1.msra.mxu0 0.0
  %861 = vmatprep.subr.mxu0 0.0
  %862 = vmatpush1.msra.mxu0 0.0
  %863 = vmatprep.subr.mxu0 0.0
  %864 = vmatpush1.msra.mxu0 0.0
  %865 = vmatprep.subr.mxu0 0.0
  %866 = vmatpush1.msra.mxu0 0.0
  %867 = vmatprep.subr.mxu0 0.0
  %868 = vmatpush1.msra.mxu0 0.0
  %869 = vmatprep.subr.mxu0 0.0
  %870 = vmatpush1.msra.mxu0 0.0
  %871 = vmatprep.subr.mxu0 0.0
  %872 = vmatpush1.msra.mxu0 0.0
  %873 = vmatprep.subr.mxu0 0.0
  %874 = vmatpush1.msra.mxu0 0.0
  %875 = vmatprep.subr.mxu0 0.0
  %876 = vmatpush1.msra.mxu0 0.0
  %877 = vmatprep.subr.mxu0 0.0
  %878 = vmatpush1.msra.mxu0 0.0
  %879 = vmatprep.subr.mxu0 0.0
  %880 = vmatpush1.msra.mxu0 0.0
  %881 = vmatprep.subr.mxu0 0.0
  %882 = vmatpush1.msra.mxu0 0.0
  %883 = vmatprep.subr.mxu0 0.0
  %884 = vmatpush1.msra.mxu0 0.0
  %885 = vmatprep.subr.mxu0 0.0
  %886 = vmatpush1.msra.mxu0 0.0
  %887 = vmatprep.subr.mxu0 0.0
  %888 = vmatpush1.msra.mxu0 0.0
  %889 = vmatprep.mubr.f32.mxu0 0.0
  %v890 = vand.u32 %v661, 4294901760
  %891 = vmatmul.mubr.f32.gmra.mrb[0].mxu0 %v890
  %v892 = vpop.f32.mrb[0].mxu0
  %v893 = vadd.f32 %v752, %v892
  %v894 = vpop.f32.mrb[0].mxu0
  %895 = vmatprep.mubr.f32.mxu0 0.0
  %v896 = vand.u32 %v664, 4294901760
  %897 = vmatmul.mubr.f32.gmra.mrb[0].mxu0 %v896
  %v898 = vpop.f32.mrb[0].mxu0
  %v899 = vadd.f32 %v762, %v898
  %v900 = vpop.f32.mrb[0].mxu0
  %901 = vmatprep.mubr.f32.mxu0 0.0
  %v902 = vand.u32 %v667, 4294901760
  %903 = vmatmul.mubr.f32.gmra.mrb[0].mxu0 %v902
  %v904 = vpop.f32.mrb[0].mxu0
  %v905 = vadd.f32 %v772, %v904
  %v906 = vpop.f32.mrb[0].mxu0
  %907 = vmatprep.mubr.f32.mxu0 0.0
  %v908 = vand.u32 %v670, 4294901760
  %909 = vmatmul.mubr.f32.gmra.mrb[0].mxu0 %v908
  %v910 = vpop.f32.mrb[0].mxu0
  %v911 = vadd.f32 %v782, %v910
  %v912 = vpop.f32.mrb[0].mxu0
  %913 = vdwg.mxu0
  %914 = vmatprep.subr.mxu0 0.0
  %v915 = vand.u32 %v644, 4294901760
  %v916 = vsub.f32 %v644, %v915
  %917 = vmatpush1.msra.mxu0 %v916
  %918 = vmatprep.subr.mxu0 0.0
  %v919 = vand.u32 %v645, 4294901760
  %v920 = vsub.f32 %v645, %v919
  %921 = vmatpush1.msra.mxu0 %v920
  %922 = vmatprep.subr.mxu0 0.0
  %v923 = vand.u32 %v646, 4294901760
  %v924 = vsub.f32 %v646, %v923
  %925 = vmatpush1.msra.mxu0 %v924
  %926 = vmatprep.subr.mxu0 0.0
  %v927 = vand.u32 %v647, 4294901760
  %v928 = vsub.f32 %v647, %v927
  %929 = vmatpush1.msra.mxu0 %v928
  %930 = vmatprep.subr.mxu0 0.0
  %v931 = vand.u32 %v648, 4294901760
  %v932 = vsub.f32 %v648, %v931
  %933 = vmatpush1.msra.mxu0 %v932
  %934 = vmatprep.subr.mxu0 0.0
  %v935 = vand.u32 %v649, 4294901760
  %v936 = vsub.f32 %v649, %v935
  %937 = vmatpush1.msra.mxu0 %v936
  %938 = vmatprep.subr.mxu0 0.0
  %v939 = vand.u32 %v650, 4294901760
  %v940 = vsub.f32 %v650, %v939
  %941 = vmatpush1.msra.mxu0 %v940
  %942 = vmatprep.subr.mxu0 0.0
  %v943 = vand.u32 %v651, 4294901760
  %v944 = vsub.f32 %v651, %v943
  %945 = vmatpush1.msra.mxu0 %v944
  %946 = vmatprep.subr.mxu0 0.0
  %947 = vmatpush1.msra.mxu0 0.0
  %948 = vmatprep.subr.mxu0 0.0
  %949 = vmatpush1.msra.mxu0 0.0
  %950 = vmatprep.subr.mxu0 0.0
  %951 = vmatpush1.msra.mxu0 0.0
  %952 = vmatprep.subr.mxu0 0.0
  %953 = vmatpush1.msra.mxu0 0.0
  %954 = vmatprep.subr.mxu0 0.0
  %955 = vmatpush1.msra.mxu0 0.0
  %956 = vmatprep.subr.mxu0 0.0
  %957 = vmatpush1.msra.mxu0 0.0
  %958 = vmatprep.subr.mxu0 0.0
  %959 = vmatpush1.msra.mxu0 0.0
  %960 = vmatprep.subr.mxu0 0.0
  %961 = vmatpush1.msra.mxu0 0.0
  %962 = vmatprep.subr.mxu0 0.0
  %963 = vmatpush1.msra.mxu0 0.0
  %964 = vmatprep.subr.mxu0 0.0
  %965 = vmatpush1.msra.mxu0 0.0
  %966 = vmatprep.subr.mxu0 0.0
  %967 = vmatpush1.msra.mxu0 0.0
  %968 = vmatprep.subr.mxu0 0.0
  %969 = vmatpush1.msra.mxu0 0.0
  %970 = vmatprep.subr.mxu0 0.0
  %971 = vmatpush1.msra.mxu0 0.0
  %972 = vmatprep.subr.mxu0 0.0
  %973 = vmatpush1.msra.mxu0 0.0
  %974 = vmatprep.subr.mxu0 0.0
  %975 = vmatpush1.msra.mxu0 0.0
  %976 = vmatprep.subr.mxu0 0.0
  %977 = vmatpush1.msra.mxu0 0.0
  %978 = vmatprep.subr.mxu0 0.0
  %979 = vmatpush1.msra.mxu0 0.0
  %980 = vmatprep.subr.mxu0 0.0
  %981 = vmatpush1.msra.mxu0 0.0
  %982 = vmatprep.subr.mxu0 0.0
  %983 = vmatpush1.msra.mxu0 0.0
  %984 = vmatprep.subr.mxu0 0.0
  %985 = vmatpush1.msra.mxu0 0.0
  %986 = vmatprep.subr.mxu0 0.0
  %987 = vmatpush1.msra.mxu0 0.0
  %988 = vmatprep.subr.mxu0 0.0
  %989 = vmatpush1.msra.mxu0 0.0
  %990 = vmatprep.subr.mxu0 0.0
  %991 = vmatpush1.msra.mxu0 0.0
  %992 = vmatprep.subr.mxu0 0.0
  %993 = vmatpush1.msra.mxu0 0.0
  %994 = vmatprep.mubr.f32.mxu0 0.0
  %v995 = vand.u32 %v661, 4294901760
  %v996 = vsub.f32 %v661, %v995
  %997 = vmatmul.mubr.f32.gmra.mrb[0].mxu0 %v996
  %v998 = vpop.f32.mrb[0].mxu0
  %v999 = vadd.f32 %v893, %v998
  %v1000 = vpop.f32.mrb[0].mxu0
  %1001 = vmatprep.mubr.f32.mxu0 0.0
  %v1002 = vand.u32 %v664, 4294901760
  %v1003 = vsub.f32 %v664, %v1002
  %1004 = vmatmul.mubr.f32.gmra.mrb[0].mxu0 %v1003
  %v1005 = vpop.f32.mrb[0].mxu0
  %v1006 = vadd.f32 %v899, %v1005
  %v1007 = vpop.f32.mrb[0].mxu0
  %1008 = vmatprep.mubr.f32.mxu0 0.0
  %v1009 = vand.u32 %v667, 4294901760
  %v1010 = vsub.f32 %v667, %v1009
  %1011 = vmatmul.mubr.f32.gmra.mrb[0].mxu0 %v1010
  %v1012 = vpop.f32.mrb[0].mxu0
  %v1013 = vadd.f32 %v905, %v1012
  %v1014 = vpop.f32.mrb[0].mxu0
  %1015 = vmatprep.mubr.f32.mxu0 0.0
  %v1016 = vand.u32 %v670, 4294901760
  %v1017 = vsub.f32 %v670, %v1016
  %1018 = vmatmul.mubr.f32.gmra.mrb[0].mxu0 %v1017
  %v1019 = vpop.f32.mrb[0].mxu0
  %v1020 = vadd.f32 %v911, %v1019
  %v1021 = vpop.f32.mrb[0].mxu0
  %1022 = vdwg.mxu0
  %1023 = vmatprep.subr.mxu0 0.0
  %v1024 = vand.u32 %v644, 4294901760
  %1025 = vmatpush1.msra.mxu0 %v1024
  %1026 = vmatprep.subr.mxu0 0.0
  %v1027 = vand.u32 %v645, 4294901760
  %1028 = vmatpush1.msra.mxu0 %v1027
  %1029 = vmatprep.subr.mxu0 0.0
  %v1030 = vand.u32 %v646, 4294901760
  %1031 = vmatpush1.msra.mxu0 %v1030
  %1032 = vmatprep.subr.mxu0 0.0
  %v1033 = vand.u32 %v647, 4294901760
  %1034 = vmatpush1.msra.mxu0 %v1033
  %1035 = vmatprep.subr.mxu0 0.0
  %v1036 = vand.u32 %v648, 4294901760
  %1037 = vmatpush1.msra.mxu0 %v1036
  %1038 = vmatprep.subr.mxu0 0.0
  %v1039 = vand.u32 %v649, 4294901760
  %1040 = vmatpush1.msra.mxu0 %v1039
  %1041 = vmatprep.subr.mxu0 0.0
  %v1042 = vand.u32 %v650, 4294901760
  %1043 = vmatpush1.msra.mxu0 %v1042
  %1044 = vmatprep.subr.mxu0 0.0
  %v1045 = vand.u32 %v651, 4294901760
  %1046 = vmatpush1.msra.mxu0 %v1045
  %1047 = vmatprep.subr.mxu0 0.0
  %1048 = vmatpush1.msra.mxu0 0.0
  %1049 = vmatprep.subr.mxu0 0.0
  %1050 = vmatpush1.msra.mxu0 0.0
  %1051 = vmatprep.subr.mxu0 0.0
  %1052 = vmatpush1.msra.mxu0 0.0
  %1053 = vmatprep.subr.mxu0 0.0
  %1054 = vmatpush1.msra.mxu0 0.0
  %1055 = vmatprep.subr.mxu0 0.0
  %1056 = vmatpush1.msra.mxu0 0.0
  %1057 = vmatprep.subr.mxu0 0.0
  %1058 = vmatpush1.msra.mxu0 0.0
  %1059 = vmatprep.subr.mxu0 0.0
  %1060 = vmatpush1.msra.mxu0 0.0
  %1061 = vmatprep.subr.mxu0 0.0
  %1062 = vmatpush1.msra.mxu0 0.0
  %1063 = vmatprep.subr.mxu0 0.0
  %1064 = vmatpush1.msra.mxu0 0.0
  %1065 = vmatprep.subr.mxu0 0.0
  %1066 = vmatpush1.msra.mxu0 0.0
  %1067 = vmatprep.subr.mxu0 0.0
  %1068 = vmatpush1.msra.mxu0 0.0
  %1069 = vmatprep.subr.mxu0 0.0
  %1070 = vmatpush1.msra.mxu0 0.0
  %1071 = vmatprep.subr.mxu0 0.0
  %1072 = vmatpush1.msra.mxu0 0.0
  %1073 = vmatprep.subr.mxu0 0.0
  %1074 = vmatpush1.msra.mxu0 0.0
  %1075 = vmatprep.subr.mxu0 0.0
  %1076 = vmatpush1.msra.mxu0 0.0
  %1077 = vmatprep.subr.mxu0 0.0
  %1078 = vmatpush1.msra.mxu0 0.0
  %1079 = vmatprep.subr.mxu0 0.0
  %1080 = vmatpush1.msra.mxu0 0.0
  %1081 = vmatprep.subr.mxu0 0.0
  %1082 = vmatpush1.msra.mxu0 0.0
  %1083 = vmatprep.subr.mxu0 0.0
  %1084 = vmatpush1.msra.mxu0 0.0
  %1085 = vmatprep.subr.mxu0 0.0
  %1086 = vmatpush1.msra.mxu0 0.0
  %1087 = vmatprep.subr.mxu0 0.0
  %1088 = vmatpush1.msra.mxu0 0.0
  %1089 = vmatprep.subr.mxu0 0.0
  %1090 = vmatpush1.msra.mxu0 0.0
  %1091 = vmatprep.subr.mxu0 0.0
  %1092 = vmatpush1.msra.mxu0 0.0
  %1093 = vmatprep.subr.mxu0 0.0
  %1094 = vmatpush1.msra.mxu0 0.0
  %1095 = vmatprep.mubr.f32.mxu0 0.0
  %v1096 = vand.u32 %v661, 4294901760
  %v1097 = vsub.f32 %v661, %v1096
  %v1098 = vand.u32 %v1097, 4294901760
  %1099 = vmatmul.mubr.f32.gmra.mrb[0].mxu0 %v1098
  %v1100 = vpop.f32.mrb[0].mxu0
  %v1101 = vadd.f32 %v999, %v1100
  %v1102 = vpop.f32.mrb[0].mxu0
  %1103 = vmatprep.mubr.f32.mxu0 0.0
  %v1104 = vand.u32 %v664, 4294901760
  %v1105 = vsub.f32 %v664, %v1104
  %v1106 = vand.u32 %v1105, 4294901760
  %1107 = vmatmul.mubr.f32.gmra.mrb[0].mxu0 %v1106
  %v1108 = vpop.f32.mrb[0].mxu0
  %v1109 = vadd.f32 %v1006, %v1108
  %v1110 = vpop.f32.mrb[0].mxu0
  %1111 = vmatprep.mubr.f32.mxu0 0.0
  %v1112 = vand.u32 %v667, 4294901760
  %v1113 = vsub.f32 %v667, %v1112
  %v1114 = vand.u32 %v1113, 4294901760
  %1115 = vmatmul.mubr.f32.gmra.mrb[0].mxu0 %v1114
  %v1116 = vpop.f32.mrb[0].mxu0
  %v1117 = vadd.f32 %v1013, %v1116
  %v1118 = vpop.f32.mrb[0].mxu0
  %1119 = vmatprep.mubr.f32.mxu0 0.0
  %v1120 = vand.u32 %v670, 4294901760
  %v1121 = vsub.f32 %v670, %v1120
  %v1122 = vand.u32 %v1121, 4294901760
  %1123 = vmatmul.mubr.f32.gmra.mrb[0].mxu0 %v1122
  %v1124 = vpop.f32.mrb[0].mxu0
  %v1125 = vadd.f32 %v1020, %v1124
  %v1126 = vpop.f32.mrb[0].mxu0
  %1127 = vdwg.mxu0
  %1128 = vmatprep.subr.mxu0 0.0
  %v1129 = vand.u32 %v644, 4294901760
  %v1130 = vsub.f32 %v644, %v1129
  %v1131 = vand.u32 %v1130, 4294901760
  %1132 = vmatpush1.msra.mxu0 %v1131
  %1133 = vmatprep.subr.mxu0 0.0
  %v1134 = vand.u32 %v645, 4294901760
  %v1135 = vsub.f32 %v645, %v1134
  %v1136 = vand.u32 %v1135, 4294901760
  %1137 = vmatpush1.msra.mxu0 %v1136
  %1138 = vmatprep.subr.mxu0 0.0
  %v1139 = vand.u32 %v646, 4294901760
  %v1140 = vsub.f32 %v646, %v1139
  %v1141 = vand.u32 %v1140, 4294901760
  %1142 = vmatpush1.msra.mxu0 %v1141
  %1143 = vmatprep.subr.mxu0 0.0
  %v1144 = vand.u32 %v647, 4294901760
  %v1145 = vsub.f32 %v647, %v1144
  %v1146 = vand.u32 %v1145, 4294901760
  %1147 = vmatpush1.msra.mxu0 %v1146
  %1148 = vmatprep.subr.mxu0 0.0
  %v1149 = vand.u32 %v648, 4294901760
  %v1150 = vsub.f32 %v648, %v1149
  %v1151 = vand.u32 %v1150, 4294901760
  %1152 = vmatpush1.msra.mxu0 %v1151
  %1153 = vmatprep.subr.mxu0 0.0
  %v1154 = vand.u32 %v649, 4294901760
  %v1155 = vsub.f32 %v649, %v1154
  %v1156 = vand.u32 %v1155, 4294901760
  %1157 = vmatpush1.msra.mxu0 %v1156
  %1158 = vmatprep.subr.mxu0 0.0
  %v1159 = vand.u32 %v650, 4294901760
  %v1160 = vsub.f32 %v650, %v1159
  %v1161 = vand.u32 %v1160, 4294901760
  %1162 = vmatpush1.msra.mxu0 %v1161
  %1163 = vmatprep.subr.mxu0 0.0
  %v1164 = vand.u32 %v651, 4294901760
  %v1165 = vsub.f32 %v651, %v1164
  %v1166 = vand.u32 %v1165, 4294901760
  %1167 = vmatpush1.msra.mxu0 %v1166
  %1168 = vmatprep.subr.mxu0 0.0
  %1169 = vmatpush1.msra.mxu0 0.0
  %1170 = vmatprep.subr.mxu0 0.0
  %1171 = vmatpush1.msra.mxu0 0.0
  %1172 = vmatprep.subr.mxu0 0.0
  %1173 = vmatpush1.msra.mxu0 0.0
  %1174 = vmatprep.subr.mxu0 0.0
  %1175 = vmatpush1.msra.mxu0 0.0
  %1176 = vmatprep.subr.mxu0 0.0
  %1177 = vmatpush1.msra.mxu0 0.0
  %1178 = vmatprep.subr.mxu0 0.0
  %1179 = vmatpush1.msra.mxu0 0.0
  %1180 = vmatprep.subr.mxu0 0.0
  %1181 = vmatpush1.msra.mxu0 0.0
  %1182 = vmatprep.subr.mxu0 0.0
  %1183 = vmatpush1.msra.mxu0 0.0
  %1184 = vmatprep.subr.mxu0 0.0
  %1185 = vmatpush1.msra.mxu0 0.0
  %1186 = vmatprep.subr.mxu0 0.0
  %1187 = vmatpush1.msra.mxu0 0.0
  %1188 = vmatprep.subr.mxu0 0.0
  %1189 = vmatpush1.msra.mxu0 0.0
  %1190 = vmatprep.subr.mxu0 0.0
  %1191 = vmatpush1.msra.mxu0 0.0
  %1192 = vmatprep.subr.mxu0 0.0
  %1193 = vmatpush1.msra.mxu0 0.0
  %1194 = vmatprep.subr.mxu0 0.0
  %1195 = vmatpush1.msra.mxu0 0.0
  %1196 = vmatprep.subr.mxu0 0.0
  %1197 = vmatpush1.msra.mxu0 0.0
  %1198 = vmatprep.subr.mxu0 0.0
  %1199 = vmatpush1.msra.mxu0 0.0
  %1200 = vmatprep.subr.mxu0 0.0
  %1201 = vmatpush1.msra.mxu0 0.0
  %1202 = vmatprep.subr.mxu0 0.0
  %1203 = vmatpush1.msra.mxu0 0.0
  %1204 = vmatprep.subr.mxu0 0.0
  %1205 = vmatpush1.msra.mxu0 0.0
  %1206 = vmatprep.subr.mxu0 0.0
  %1207 = vmatpush1.msra.mxu0 0.0
  %1208 = vmatprep.subr.mxu0 0.0
  %1209 = vmatpush1.msra.mxu0 0.0
  %1210 = vmatprep.subr.mxu0 0.0
  %1211 = vmatpush1.msra.mxu0 0.0
  %1212 = vmatprep.subr.mxu0 0.0
  %1213 = vmatpush1.msra.mxu0 0.0
  %1214 = vmatprep.subr.mxu0 0.0
  %1215 = vmatpush1.msra.mxu0 0.0
  %1216 = vmatprep.mubr.f32.mxu0 0.0
  %v1217 = vand.u32 %v661, 4294901760
  %1218 = vmatmul.mubr.f32.gmra.mrb[0].mxu0 %v1217
  %v1219 = vpop.f32.mrb[0].mxu0
  %v1220 = vadd.f32 %v1101, %v1219
  %v1221 = vpop.f32.mrb[0].mxu0
  %1222 = vmatprep.mubr.f32.mxu0 0.0
  %v1223 = vand.u32 %v664, 4294901760
  %1224 = vmatmul.mubr.f32.gmra.mrb[0].mxu0 %v1223
  %v1225 = vpop.f32.mrb[0].mxu0
  %v1226 = vadd.f32 %v1109, %v1225
  %v1227 = vpop.f32.mrb[0].mxu0
  %1228 = vmatprep.mubr.f32.mxu0 0.0
  %v1229 = vand.u32 %v667, 4294901760
  %1230 = vmatmul.mubr.f32.gmra.mrb[0].mxu0 %v1229
  %v1231 = vpop.f32.mrb[0].mxu0
  %v1232 = vadd.f32 %v1117, %v1231
  %v1233 = vpop.f32.mrb[0].mxu0
  %1234 = vmatprep.mubr.f32.mxu0 0.0
  %v1235 = vand.u32 %v670, 4294901760
  %1236 = vmatmul.mubr.f32.gmra.mrb[0].mxu0 %v1235
  %v1237 = vpop.f32.mrb[0].mxu0
  %v1238 = vadd.f32 %v1125, %v1237
  %v1239 = vpop.f32.mrb[0].mxu0
  %1240 = vdwg.mxu0
  %1241 = vmatprep.subr.mxu0 0.0
  %v1242 = vand.u32 %v644, 4294901760
  %1243 = vmatpush1.msra.mxu0 %v1242
  %1244 = vmatprep.subr.mxu0 0.0
  %v1245 = vand.u32 %v645, 4294901760
  %1246 = vmatpush1.msra.mxu0 %v1245
  %1247 = vmatprep.subr.mxu0 0.0
  %v1248 = vand.u32 %v646, 4294901760
  %1249 = vmatpush1.msra.mxu0 %v1248
  %1250 = vmatprep.subr.mxu0 0.0
  %v1251 = vand.u32 %v647, 4294901760
  %1252 = vmatpush1.msra.mxu0 %v1251
  %1253 = vmatprep.subr.mxu0 0.0
  %v1254 = vand.u32 %v648, 4294901760
  %1255 = vmatpush1.msra.mxu0 %v1254
  %1256 = vmatprep.subr.mxu0 0.0
  %v1257 = vand.u32 %v649, 4294901760
  %1258 = vmatpush1.msra.mxu0 %v1257
  %1259 = vmatprep.subr.mxu0 0.0
  %v1260 = vand.u32 %v650, 4294901760
  %1261 = vmatpush1.msra.mxu0 %v1260
  %1262 = vmatprep.subr.mxu0 0.0
  %v1263 = vand.u32 %v651, 4294901760
  %1264 = vmatpush1.msra.mxu0 %v1263
  %1265 = vmatprep.subr.mxu0 0.0
  %1266 = vmatpush1.msra.mxu0 0.0
  %1267 = vmatprep.subr.mxu0 0.0
  %1268 = vmatpush1.msra.mxu0 0.0
  %1269 = vmatprep.subr.mxu0 0.0
  %1270 = vmatpush1.msra.mxu0 0.0
  %1271 = vmatprep.subr.mxu0 0.0
  %1272 = vmatpush1.msra.mxu0 0.0
  %1273 = vmatprep.subr.mxu0 0.0
  %1274 = vmatpush1.msra.mxu0 0.0
  %1275 = vmatprep.subr.mxu0 0.0
  %1276 = vmatpush1.msra.mxu0 0.0
  %1277 = vmatprep.subr.mxu0 0.0
  %1278 = vmatpush1.msra.mxu0 0.0
  %1279 = vmatprep.subr.mxu0 0.0
  %1280 = vmatpush1.msra.mxu0 0.0
  %1281 = vmatprep.subr.mxu0 0.0
  %1282 = vmatpush1.msra.mxu0 0.0
  %1283 = vmatprep.subr.mxu0 0.0
  %1284 = vmatpush1.msra.mxu0 0.0
  %1285 = vmatprep.subr.mxu0 0.0
  %1286 = vmatpush1.msra.mxu0 0.0
  %1287 = vmatprep.subr.mxu0 0.0
  %1288 = vmatpush1.msra.mxu0 0.0
  %1289 = vmatprep.subr.mxu0 0.0
  %1290 = vmatpush1.msra.mxu0 0.0
  %1291 = vmatprep.subr.mxu0 0.0
  %1292 = vmatpush1.msra.mxu0 0.0
  %1293 = vmatprep.subr.mxu0 0.0
  %1294 = vmatpush1.msra.mxu0 0.0
  %1295 = vmatprep.subr.mxu0 0.0
  %1296 = vmatpush1.msra.mxu0 0.0
  %1297 = vmatprep.subr.mxu0 0.0
  %1298 = vmatpush1.msra.mxu0 0.0
  %1299 = vmatprep.subr.mxu0 0.0
  %1300 = vmatpush1.msra.mxu0 0.0
  %1301 = vmatprep.subr.mxu0 0.0
  %1302 = vmatpush1.msra.mxu0 0.0
  %1303 = vmatprep.subr.mxu0 0.0
  %1304 = vmatpush1.msra.mxu0 0.0
  %1305 = vmatprep.subr.mxu0 0.0
  %1306 = vmatpush1.msra.mxu0 0.0
  %1307 = vmatprep.subr.mxu0 0.0
  %1308 = vmatpush1.msra.mxu0 0.0
  %1309 = vmatprep.subr.mxu0 0.0
  %1310 = vmatpush1.msra.mxu0 0.0
  %1311 = vmatprep.subr.mxu0 0.0
  %1312 = vmatpush1.msra.mxu0 0.0
  %1313 = vmatprep.mubr.f32.mxu0 0.0
  %v1314 = vand.u32 %v661, 4294901760
  %1315 = vmatmul.mubr.f32.gmra.mrb[0].mxu0 %v1314
  %v1316 = vpop.f32.mrb[0].mxu0
  %v1317 = vadd.f32 %v1220, %v1316
  %v1318 = vpop.f32.mrb[0].mxu0
  %1319 = vmatprep.mubr.f32.mxu0 0.0
  %v1320 = vand.u32 %v664, 4294901760
  %1321 = vmatmul.mubr.f32.gmra.mrb[0].mxu0 %v1320
  %v1322 = vpop.f32.mrb[0].mxu0
  %v1323 = vadd.f32 %v1226, %v1322
  %v1324 = vpop.f32.mrb[0].mxu0
  %1325 = vmatprep.mubr.f32.mxu0 0.0
  %v1326 = vand.u32 %v667, 4294901760
  %1327 = vmatmul.mubr.f32.gmra.mrb[0].mxu0 %v1326
  %v1328 = vpop.f32.mrb[0].mxu0
  %v1329 = vadd.f32 %v1232, %v1328
  %v1330 = vpop.f32.mrb[0].mxu0
  %1331 = vmatprep.mubr.f32.mxu0 0.0
  %v1332 = vand.u32 %v670, 4294901760
  %1333 = vmatmul.mubr.f32.gmra.mrb[0].mxu0 %v1332
  %v1334 = vpop.f32.mrb[0].mxu0
  %v1335 = vadd.f32 %v1238, %v1334
  %v1336 = vpop.f32.mrb[0].mxu0
  %1337 = vdwg.mxu0
  %v1338 = vmax.f32 %v1317, 0.0
  %v1339 = vmax.f32 %v1323, 0.0
  %v1340 = vmax.f32 %v1329, 0.0
  %v1341 = vmax.f32 %v1335, 0.0
  %v1342 = vld [vmem:[%s5] sm:$0xff]
  %v1343 = vld [vmem:[%s5 + $0x8] sm:$0xff]
  %v1344 = vld [vmem:[%s5 + $0x10] sm:$0xff]
  %v1345 = vld [vmem:[%s5 + $0x18] sm:$0xff]
  %v1346 = vld [vmem:[%s6] sm:$0x1]
  %v1348 = vlaneseq
  %v1349 = vshrl.u32 %v1348, 7
  %v1350 = vsub.s32 0, %v1349
  %v1351 = vrot.slane %v1346, %v1350
  %vm1353 = vcmask 261120
  %v1355 = vsel %vm1353, %v1338, 0
  %v1358 = vsel %vm1353, %v1339, 0
  %v1361 = vsel %vm1353, %v1340, 0
  %v1364 = vsel %vm1353, %v1341, 0
  %1366 = vmatprep.subr.mxu0 0.0
  %v1367 = vand.u32 %v1342, 4294901760
  %1368 = vmatpush1.msra.mxu0 %v1367
  %1369 = vmatprep.subr.mxu0 0.0
  %v1370 = vand.u32 %v1343, 4294901760
  %1371 = vmatpush1.msra.mxu0 %v1370
  %1372 = vmatprep.subr.mxu0 0.0
  %v1373 = vand.u32 %v1344, 4294901760
  %1374 = vmatpush1.msra.mxu0 %v1373
  %1375 = vmatprep.subr.mxu0 0.0
  %v1376 = vand.u32 %v1345, 4294901760
  %1377 = vmatpush1.msra.mxu0 %v1376
  %1378 = vmatprep.subr.mxu0 0.0
  %1379 = vmatpush1.msra.mxu0 0.0
  %1380 = vmatprep.subr.mxu0 0.0
  %1381 = vmatpush1.msra.mxu0 0.0
  %1382 = vmatprep.subr.mxu0 0.0
  %1383 = vmatpush1.msra.mxu0 0.0
  %1384 = vmatprep.subr.mxu0 0.0
  %1385 = vmatpush1.msra.mxu0 0.0
  %1386 = vmatprep.subr.mxu0 0.0
  %1387 = vmatpush1.msra.mxu0 0.0
  %1388 = vmatprep.subr.mxu0 0.0
  %1389 = vmatpush1.msra.mxu0 0.0
  %1390 = vmatprep.subr.mxu0 0.0
  %1391 = vmatpush1.msra.mxu0 0.0
  %1392 = vmatprep.subr.mxu0 0.0
  %1393 = vmatpush1.msra.mxu0 0.0
  %1394 = vmatprep.subr.mxu0 0.0
  %1395 = vmatpush1.msra.mxu0 0.0
  %1396 = vmatprep.subr.mxu0 0.0
  %1397 = vmatpush1.msra.mxu0 0.0
  %1398 = vmatprep.subr.mxu0 0.0
  %1399 = vmatpush1.msra.mxu0 0.0
  %1400 = vmatprep.subr.mxu0 0.0
  %1401 = vmatpush1.msra.mxu0 0.0
  %1402 = vmatprep.subr.mxu0 0.0
  %1403 = vmatpush1.msra.mxu0 0.0
  %1404 = vmatprep.subr.mxu0 0.0
  %1405 = vmatpush1.msra.mxu0 0.0
  %1406 = vmatprep.subr.mxu0 0.0
  %1407 = vmatpush1.msra.mxu0 0.0
  %1408 = vmatprep.subr.mxu0 0.0
  %1409 = vmatpush1.msra.mxu0 0.0
  %1410 = vmatprep.subr.mxu0 0.0
  %1411 = vmatpush1.msra.mxu0 0.0
  %1412 = vmatprep.subr.mxu0 0.0
  %1413 = vmatpush1.msra.mxu0 0.0
  %1414 = vmatprep.subr.mxu0 0.0
  %1415 = vmatpush1.msra.mxu0 0.0
  %1416 = vmatprep.subr.mxu0 0.0
  %1417 = vmatpush1.msra.mxu0 0.0
  %1418 = vmatprep.subr.mxu0 0.0
  %1419 = vmatpush1.msra.mxu0 0.0
  %1420 = vmatprep.subr.mxu0 0.0
  %1421 = vmatpush1.msra.mxu0 0.0
  %1422 = vmatprep.subr.mxu0 0.0
  %1423 = vmatpush1.msra.mxu0 0.0
  %1424 = vmatprep.subr.mxu0 0.0
  %1425 = vmatpush1.msra.mxu0 0.0
  %1426 = vmatprep.subr.mxu0 0.0
  %1427 = vmatpush1.msra.mxu0 0.0
  %1428 = vmatprep.subr.mxu0 0.0
  %1429 = vmatpush1.msra.mxu0 0.0
  %1430 = vmatprep.subr.mxu0 0.0
  %1431 = vmatpush1.msra.mxu0 0.0
  %1432 = vmatprep.subr.mxu0 0.0
  %1433 = vmatpush1.msra.mxu0 0.0
  %1434 = vmatprep.mubr.f32.mxu0 0.0
  %v1435 = vand.u32 %v1355, 4294901760
  %v1436 = vsub.f32 %v1355, %v1435
  %v1437 = vand.u32 %v1436, 4294901760
  %v1438 = vsub.f32 %v1436, %v1437
  %v1439 = vand.u32 %v1438, 4294901760
  %1440 = vmatmul.mubr.f32.gmra.mrb[0].mxu0 %v1439
  %v1441 = vpop.f32.mrb[0].mxu0
  %v1442 = vadd.f32 %v1351, %v1441
  %v1443 = vpop.f32.mrb[0].mxu0
  %1444 = vmatprep.mubr.f32.mxu0 0.0
  %v1445 = vand.u32 %v1358, 4294901760
  %v1446 = vsub.f32 %v1358, %v1445
  %v1447 = vand.u32 %v1446, 4294901760
  %v1448 = vsub.f32 %v1446, %v1447
  %v1449 = vand.u32 %v1448, 4294901760
  %1450 = vmatmul.mubr.f32.gmra.mrb[0].mxu0 %v1449
  %v1451 = vpop.f32.mrb[0].mxu0
  %v1452 = vadd.f32 %v1351, %v1451
  %v1453 = vpop.f32.mrb[0].mxu0
  %1454 = vmatprep.mubr.f32.mxu0 0.0
  %v1455 = vand.u32 %v1361, 4294901760
  %v1456 = vsub.f32 %v1361, %v1455
  %v1457 = vand.u32 %v1456, 4294901760
  %v1458 = vsub.f32 %v1456, %v1457
  %v1459 = vand.u32 %v1458, 4294901760
  %1460 = vmatmul.mubr.f32.gmra.mrb[0].mxu0 %v1459
  %v1461 = vpop.f32.mrb[0].mxu0
  %v1462 = vadd.f32 %v1351, %v1461
  %v1463 = vpop.f32.mrb[0].mxu0
  %1464 = vmatprep.mubr.f32.mxu0 0.0
  %v1465 = vand.u32 %v1364, 4294901760
  %v1466 = vsub.f32 %v1364, %v1465
  %v1467 = vand.u32 %v1466, 4294901760
  %v1468 = vsub.f32 %v1466, %v1467
  %v1469 = vand.u32 %v1468, 4294901760
  %1470 = vmatmul.mubr.f32.gmra.mrb[0].mxu0 %v1469
  %v1471 = vpop.f32.mrb[0].mxu0
  %v1472 = vadd.f32 %v1351, %v1471
  %v1473 = vpop.f32.mrb[0].mxu0
  %1474 = vdwg.mxu0
  %1475 = vmatprep.subr.mxu0 0.0
  %v1476 = vand.u32 %v1342, 4294901760
  %v1477 = vsub.f32 %v1342, %v1476
  %v1478 = vand.u32 %v1477, 4294901760
  %v1479 = vsub.f32 %v1477, %v1478
  %v1480 = vand.u32 %v1479, 4294901760
  %1481 = vmatpush1.msra.mxu0 %v1480
  %1482 = vmatprep.subr.mxu0 0.0
  %v1483 = vand.u32 %v1343, 4294901760
  %v1484 = vsub.f32 %v1343, %v1483
  %v1485 = vand.u32 %v1484, 4294901760
  %v1486 = vsub.f32 %v1484, %v1485
  %v1487 = vand.u32 %v1486, 4294901760
  %1488 = vmatpush1.msra.mxu0 %v1487
  %1489 = vmatprep.subr.mxu0 0.0
  %v1490 = vand.u32 %v1344, 4294901760
  %v1491 = vsub.f32 %v1344, %v1490
  %v1492 = vand.u32 %v1491, 4294901760
  %v1493 = vsub.f32 %v1491, %v1492
  %v1494 = vand.u32 %v1493, 4294901760
  %1495 = vmatpush1.msra.mxu0 %v1494
  %1496 = vmatprep.subr.mxu0 0.0
  %v1497 = vand.u32 %v1345, 4294901760
  %v1498 = vsub.f32 %v1345, %v1497
  %v1499 = vand.u32 %v1498, 4294901760
  %v1500 = vsub.f32 %v1498, %v1499
  %v1501 = vand.u32 %v1500, 4294901760
  %1502 = vmatpush1.msra.mxu0 %v1501
  %1503 = vmatprep.subr.mxu0 0.0
  %1504 = vmatpush1.msra.mxu0 0.0
  %1505 = vmatprep.subr.mxu0 0.0
  %1506 = vmatpush1.msra.mxu0 0.0
  %1507 = vmatprep.subr.mxu0 0.0
  %1508 = vmatpush1.msra.mxu0 0.0
  %1509 = vmatprep.subr.mxu0 0.0
  %1510 = vmatpush1.msra.mxu0 0.0
  %1511 = vmatprep.subr.mxu0 0.0
  %1512 = vmatpush1.msra.mxu0 0.0
  %1513 = vmatprep.subr.mxu0 0.0
  %1514 = vmatpush1.msra.mxu0 0.0
  %1515 = vmatprep.subr.mxu0 0.0
  %1516 = vmatpush1.msra.mxu0 0.0
  %1517 = vmatprep.subr.mxu0 0.0
  %1518 = vmatpush1.msra.mxu0 0.0
  %1519 = vmatprep.subr.mxu0 0.0
  %1520 = vmatpush1.msra.mxu0 0.0
  %1521 = vmatprep.subr.mxu0 0.0
  %1522 = vmatpush1.msra.mxu0 0.0
  %1523 = vmatprep.subr.mxu0 0.0
  %1524 = vmatpush1.msra.mxu0 0.0
  %1525 = vmatprep.subr.mxu0 0.0
  %1526 = vmatpush1.msra.mxu0 0.0
  %1527 = vmatprep.subr.mxu0 0.0
  %1528 = vmatpush1.msra.mxu0 0.0
  %1529 = vmatprep.subr.mxu0 0.0
  %1530 = vmatpush1.msra.mxu0 0.0
  %1531 = vmatprep.subr.mxu0 0.0
  %1532 = vmatpush1.msra.mxu0 0.0
  %1533 = vmatprep.subr.mxu0 0.0
  %1534 = vmatpush1.msra.mxu0 0.0
  %1535 = vmatprep.subr.mxu0 0.0
  %1536 = vmatpush1.msra.mxu0 0.0
  %1537 = vmatprep.subr.mxu0 0.0
  %1538 = vmatpush1.msra.mxu0 0.0
  %1539 = vmatprep.subr.mxu0 0.0
  %1540 = vmatpush1.msra.mxu0 0.0
  %1541 = vmatprep.subr.mxu0 0.0
  %1542 = vmatpush1.msra.mxu0 0.0
  %1543 = vmatprep.subr.mxu0 0.0
  %1544 = vmatpush1.msra.mxu0 0.0
  %1545 = vmatprep.subr.mxu0 0.0
  %1546 = vmatpush1.msra.mxu0 0.0
  %1547 = vmatprep.subr.mxu0 0.0
  %1548 = vmatpush1.msra.mxu0 0.0
  %1549 = vmatprep.subr.mxu0 0.0
  %1550 = vmatpush1.msra.mxu0 0.0
  %1551 = vmatprep.subr.mxu0 0.0
  %1552 = vmatpush1.msra.mxu0 0.0
  %1553 = vmatprep.subr.mxu0 0.0
  %1554 = vmatpush1.msra.mxu0 0.0
  %1555 = vmatprep.subr.mxu0 0.0
  %1556 = vmatpush1.msra.mxu0 0.0
  %1557 = vmatprep.subr.mxu0 0.0
  %1558 = vmatpush1.msra.mxu0 0.0
  %1559 = vmatprep.mubr.f32.mxu0 0.0
  %v1560 = vand.u32 %v1355, 4294901760
  %1561 = vmatmul.mubr.f32.gmra.mrb[0].mxu0 %v1560
  %v1562 = vpop.f32.mrb[0].mxu0
  %v1563 = vadd.f32 %v1442, %v1562
  %v1564 = vpop.f32.mrb[0].mxu0
  %1565 = vmatprep.mubr.f32.mxu0 0.0
  %v1566 = vand.u32 %v1358, 4294901760
  %1567 = vmatmul.mubr.f32.gmra.mrb[0].mxu0 %v1566
  %v1568 = vpop.f32.mrb[0].mxu0
  %v1569 = vadd.f32 %v1452, %v1568
  %v1570 = vpop.f32.mrb[0].mxu0
  %1571 = vmatprep.mubr.f32.mxu0 0.0
  %v1572 = vand.u32 %v1361, 4294901760
  %1573 = vmatmul.mubr.f32.gmra.mrb[0].mxu0 %v1572
  %v1574 = vpop.f32.mrb[0].mxu0
  %v1575 = vadd.f32 %v1462, %v1574
  %v1576 = vpop.f32.mrb[0].mxu0
  %1577 = vmatprep.mubr.f32.mxu0 0.0
  %v1578 = vand.u32 %v1364, 4294901760
  %1579 = vmatmul.mubr.f32.gmra.mrb[0].mxu0 %v1578
  %v1580 = vpop.f32.mrb[0].mxu0
  %v1581 = vadd.f32 %v1472, %v1580
  %v1582 = vpop.f32.mrb[0].mxu0
  %1583 = vdwg.mxu0
  %1584 = vmatprep.subr.mxu0 0.0
  %v1585 = vand.u32 %v1342, 4294901760
  %v1586 = vsub.f32 %v1342, %v1585
  %1587 = vmatpush1.msra.mxu0 %v1586
  %1588 = vmatprep.subr.mxu0 0.0
  %v1589 = vand.u32 %v1343, 4294901760
  %v1590 = vsub.f32 %v1343, %v1589
  %1591 = vmatpush1.msra.mxu0 %v1590
  %1592 = vmatprep.subr.mxu0 0.0
  %v1593 = vand.u32 %v1344, 4294901760
  %v1594 = vsub.f32 %v1344, %v1593
  %1595 = vmatpush1.msra.mxu0 %v1594
  %1596 = vmatprep.subr.mxu0 0.0
  %v1597 = vand.u32 %v1345, 4294901760
  %v1598 = vsub.f32 %v1345, %v1597
  %1599 = vmatpush1.msra.mxu0 %v1598
  %1600 = vmatprep.subr.mxu0 0.0
  %1601 = vmatpush1.msra.mxu0 0.0
  %1602 = vmatprep.subr.mxu0 0.0
  %1603 = vmatpush1.msra.mxu0 0.0
  %1604 = vmatprep.subr.mxu0 0.0
  %1605 = vmatpush1.msra.mxu0 0.0
  %1606 = vmatprep.subr.mxu0 0.0
  %1607 = vmatpush1.msra.mxu0 0.0
  %1608 = vmatprep.subr.mxu0 0.0
  %1609 = vmatpush1.msra.mxu0 0.0
  %1610 = vmatprep.subr.mxu0 0.0
  %1611 = vmatpush1.msra.mxu0 0.0
  %1612 = vmatprep.subr.mxu0 0.0
  %1613 = vmatpush1.msra.mxu0 0.0
  %1614 = vmatprep.subr.mxu0 0.0
  %1615 = vmatpush1.msra.mxu0 0.0
  %1616 = vmatprep.subr.mxu0 0.0
  %1617 = vmatpush1.msra.mxu0 0.0
  %1618 = vmatprep.subr.mxu0 0.0
  %1619 = vmatpush1.msra.mxu0 0.0
  %1620 = vmatprep.subr.mxu0 0.0
  %1621 = vmatpush1.msra.mxu0 0.0
  %1622 = vmatprep.subr.mxu0 0.0
  %1623 = vmatpush1.msra.mxu0 0.0
  %1624 = vmatprep.subr.mxu0 0.0
  %1625 = vmatpush1.msra.mxu0 0.0
  %1626 = vmatprep.subr.mxu0 0.0
  %1627 = vmatpush1.msra.mxu0 0.0
  %1628 = vmatprep.subr.mxu0 0.0
  %1629 = vmatpush1.msra.mxu0 0.0
  %1630 = vmatprep.subr.mxu0 0.0
  %1631 = vmatpush1.msra.mxu0 0.0
  %1632 = vmatprep.subr.mxu0 0.0
  %1633 = vmatpush1.msra.mxu0 0.0
  %1634 = vmatprep.subr.mxu0 0.0
  %1635 = vmatpush1.msra.mxu0 0.0
  %1636 = vmatprep.subr.mxu0 0.0
  %1637 = vmatpush1.msra.mxu0 0.0
  %1638 = vmatprep.subr.mxu0 0.0
  %1639 = vmatpush1.msra.mxu0 0.0
  %1640 = vmatprep.subr.mxu0 0.0
  %1641 = vmatpush1.msra.mxu0 0.0
  %1642 = vmatprep.subr.mxu0 0.0
  %1643 = vmatpush1.msra.mxu0 0.0
  %1644 = vmatprep.subr.mxu0 0.0
  %1645 = vmatpush1.msra.mxu0 0.0
  %1646 = vmatprep.subr.mxu0 0.0
  %1647 = vmatpush1.msra.mxu0 0.0
  %1648 = vmatprep.subr.mxu0 0.0
  %1649 = vmatpush1.msra.mxu0 0.0
  %1650 = vmatprep.subr.mxu0 0.0
  %1651 = vmatpush1.msra.mxu0 0.0
  %1652 = vmatprep.subr.mxu0 0.0
  %1653 = vmatpush1.msra.mxu0 0.0
  %1654 = vmatprep.subr.mxu0 0.0
  %1655 = vmatpush1.msra.mxu0 0.0
  %1656 = vmatprep.mubr.f32.mxu0 0.0
  %v1657 = vand.u32 %v1355, 4294901760
  %v1658 = vsub.f32 %v1355, %v1657
  %1659 = vmatmul.mubr.f32.gmra.mrb[0].mxu0 %v1658
  %v1660 = vpop.f32.mrb[0].mxu0
  %v1661 = vadd.f32 %v1563, %v1660
  %v1662 = vpop.f32.mrb[0].mxu0
  %1663 = vmatprep.mubr.f32.mxu0 0.0
  %v1664 = vand.u32 %v1358, 4294901760
  %v1665 = vsub.f32 %v1358, %v1664
  %1666 = vmatmul.mubr.f32.gmra.mrb[0].mxu0 %v1665
  %v1667 = vpop.f32.mrb[0].mxu0
  %v1668 = vadd.f32 %v1569, %v1667
  %v1669 = vpop.f32.mrb[0].mxu0
  %1670 = vmatprep.mubr.f32.mxu0 0.0
  %v1671 = vand.u32 %v1361, 4294901760
  %v1672 = vsub.f32 %v1361, %v1671
  %1673 = vmatmul.mubr.f32.gmra.mrb[0].mxu0 %v1672
  %v1674 = vpop.f32.mrb[0].mxu0
  %v1675 = vadd.f32 %v1575, %v1674
  %v1676 = vpop.f32.mrb[0].mxu0
  %1677 = vmatprep.mubr.f32.mxu0 0.0
  %v1678 = vand.u32 %v1364, 4294901760
  %v1679 = vsub.f32 %v1364, %v1678
  %1680 = vmatmul.mubr.f32.gmra.mrb[0].mxu0 %v1679
  %v1681 = vpop.f32.mrb[0].mxu0
  %v1682 = vadd.f32 %v1581, %v1681
  %v1683 = vpop.f32.mrb[0].mxu0
  %1684 = vdwg.mxu0
  %1685 = vmatprep.subr.mxu0 0.0
  %v1686 = vand.u32 %v1342, 4294901760
  %1687 = vmatpush1.msra.mxu0 %v1686
  %1688 = vmatprep.subr.mxu0 0.0
  %v1689 = vand.u32 %v1343, 4294901760
  %1690 = vmatpush1.msra.mxu0 %v1689
  %1691 = vmatprep.subr.mxu0 0.0
  %v1692 = vand.u32 %v1344, 4294901760
  %1693 = vmatpush1.msra.mxu0 %v1692
  %1694 = vmatprep.subr.mxu0 0.0
  %v1695 = vand.u32 %v1345, 4294901760
  %1696 = vmatpush1.msra.mxu0 %v1695
  %1697 = vmatprep.subr.mxu0 0.0
  %1698 = vmatpush1.msra.mxu0 0.0
  %1699 = vmatprep.subr.mxu0 0.0
  %1700 = vmatpush1.msra.mxu0 0.0
  %1701 = vmatprep.subr.mxu0 0.0
  %1702 = vmatpush1.msra.mxu0 0.0
  %1703 = vmatprep.subr.mxu0 0.0
  %1704 = vmatpush1.msra.mxu0 0.0
  %1705 = vmatprep.subr.mxu0 0.0
  %1706 = vmatpush1.msra.mxu0 0.0
  %1707 = vmatprep.subr.mxu0 0.0
  %1708 = vmatpush1.msra.mxu0 0.0
  %1709 = vmatprep.subr.mxu0 0.0
  %1710 = vmatpush1.msra.mxu0 0.0
  %1711 = vmatprep.subr.mxu0 0.0
  %1712 = vmatpush1.msra.mxu0 0.0
  %1713 = vmatprep.subr.mxu0 0.0
  %1714 = vmatpush1.msra.mxu0 0.0
  %1715 = vmatprep.subr.mxu0 0.0
  %1716 = vmatpush1.msra.mxu0 0.0
  %1717 = vmatprep.subr.mxu0 0.0
  %1718 = vmatpush1.msra.mxu0 0.0
  %1719 = vmatprep.subr.mxu0 0.0
  %1720 = vmatpush1.msra.mxu0 0.0
  %1721 = vmatprep.subr.mxu0 0.0
  %1722 = vmatpush1.msra.mxu0 0.0
  %1723 = vmatprep.subr.mxu0 0.0
  %1724 = vmatpush1.msra.mxu0 0.0
  %1725 = vmatprep.subr.mxu0 0.0
  %1726 = vmatpush1.msra.mxu0 0.0
  %1727 = vmatprep.subr.mxu0 0.0
  %1728 = vmatpush1.msra.mxu0 0.0
  %1729 = vmatprep.subr.mxu0 0.0
  %1730 = vmatpush1.msra.mxu0 0.0
  %1731 = vmatprep.subr.mxu0 0.0
  %1732 = vmatpush1.msra.mxu0 0.0
  %1733 = vmatprep.subr.mxu0 0.0
  %1734 = vmatpush1.msra.mxu0 0.0
  %1735 = vmatprep.subr.mxu0 0.0
  %1736 = vmatpush1.msra.mxu0 0.0
  %1737 = vmatprep.subr.mxu0 0.0
  %1738 = vmatpush1.msra.mxu0 0.0
  %1739 = vmatprep.subr.mxu0 0.0
  %1740 = vmatpush1.msra.mxu0 0.0
  %1741 = vmatprep.subr.mxu0 0.0
  %1742 = vmatpush1.msra.mxu0 0.0
  %1743 = vmatprep.subr.mxu0 0.0
  %1744 = vmatpush1.msra.mxu0 0.0
  %1745 = vmatprep.subr.mxu0 0.0
  %1746 = vmatpush1.msra.mxu0 0.0
  %1747 = vmatprep.subr.mxu0 0.0
  %1748 = vmatpush1.msra.mxu0 0.0
  %1749 = vmatprep.subr.mxu0 0.0
  %1750 = vmatpush1.msra.mxu0 0.0
  %1751 = vmatprep.subr.mxu0 0.0
  %1752 = vmatpush1.msra.mxu0 0.0
  %1753 = vmatprep.mubr.f32.mxu0 0.0
  %v1754 = vand.u32 %v1355, 4294901760
  %v1755 = vsub.f32 %v1355, %v1754
  %v1756 = vand.u32 %v1755, 4294901760
  %1757 = vmatmul.mubr.f32.gmra.mrb[0].mxu0 %v1756
  %v1758 = vpop.f32.mrb[0].mxu0
  %v1759 = vadd.f32 %v1661, %v1758
  %v1760 = vpop.f32.mrb[0].mxu0
  %1761 = vmatprep.mubr.f32.mxu0 0.0
  %v1762 = vand.u32 %v1358, 4294901760
  %v1763 = vsub.f32 %v1358, %v1762
  %v1764 = vand.u32 %v1763, 4294901760
  %1765 = vmatmul.mubr.f32.gmra.mrb[0].mxu0 %v1764
  %v1766 = vpop.f32.mrb[0].mxu0
  %v1767 = vadd.f32 %v1668, %v1766
  %v1768 = vpop.f32.mrb[0].mxu0
  %1769 = vmatprep.mubr.f32.mxu0 0.0
  %v1770 = vand.u32 %v1361, 4294901760
  %v1771 = vsub.f32 %v1361, %v1770
  %v1772 = vand.u32 %v1771, 4294901760
  %1773 = vmatmul.mubr.f32.gmra.mrb[0].mxu0 %v1772
  %v1774 = vpop.f32.mrb[0].mxu0
  %v1775 = vadd.f32 %v1675, %v1774
  %v1776 = vpop.f32.mrb[0].mxu0
  %1777 = vmatprep.mubr.f32.mxu0 0.0
  %v1778 = vand.u32 %v1364, 4294901760
  %v1779 = vsub.f32 %v1364, %v1778
  %v1780 = vand.u32 %v1779, 4294901760
  %1781 = vmatmul.mubr.f32.gmra.mrb[0].mxu0 %v1780
  %v1782 = vpop.f32.mrb[0].mxu0
  %v1783 = vadd.f32 %v1682, %v1782
  %v1784 = vpop.f32.mrb[0].mxu0
  %1785 = vdwg.mxu0
  %1786 = vmatprep.subr.mxu0 0.0
  %v1787 = vand.u32 %v1342, 4294901760
  %v1788 = vsub.f32 %v1342, %v1787
  %v1789 = vand.u32 %v1788, 4294901760
  %1790 = vmatpush1.msra.mxu0 %v1789
  %1791 = vmatprep.subr.mxu0 0.0
  %v1792 = vand.u32 %v1343, 4294901760
  %v1793 = vsub.f32 %v1343, %v1792
  %v1794 = vand.u32 %v1793, 4294901760
  %1795 = vmatpush1.msra.mxu0 %v1794
  %1796 = vmatprep.subr.mxu0 0.0
  %v1797 = vand.u32 %v1344, 4294901760
  %v1798 = vsub.f32 %v1344, %v1797
  %v1799 = vand.u32 %v1798, 4294901760
  %1800 = vmatpush1.msra.mxu0 %v1799
  %1801 = vmatprep.subr.mxu0 0.0
  %v1802 = vand.u32 %v1345, 4294901760
  %v1803 = vsub.f32 %v1345, %v1802
  %v1804 = vand.u32 %v1803, 4294901760
  %1805 = vmatpush1.msra.mxu0 %v1804
  %1806 = vmatprep.subr.mxu0 0.0
  %1807 = vmatpush1.msra.mxu0 0.0
  %1808 = vmatprep.subr.mxu0 0.0
  %1809 = vmatpush1.msra.mxu0 0.0
  %1810 = vmatprep.subr.mxu0 0.0
  %1811 = vmatpush1.msra.mxu0 0.0
  %1812 = vmatprep.subr.mxu0 0.0
  %1813 = vmatpush1.msra.mxu0 0.0
  %1814 = vmatprep.subr.mxu0 0.0
  %1815 = vmatpush1.msra.mxu0 0.0
  %1816 = vmatprep.subr.mxu0 0.0
  %1817 = vmatpush1.msra.mxu0 0.0
  %1818 = vmatprep.subr.mxu0 0.0
  %1819 = vmatpush1.msra.mxu0 0.0
  %1820 = vmatprep.subr.mxu0 0.0
  %1821 = vmatpush1.msra.mxu0 0.0
  %1822 = vmatprep.subr.mxu0 0.0
  %1823 = vmatpush1.msra.mxu0 0.0
  %1824 = vmatprep.subr.mxu0 0.0
  %1825 = vmatpush1.msra.mxu0 0.0
  %1826 = vmatprep.subr.mxu0 0.0
  %1827 = vmatpush1.msra.mxu0 0.0
  %1828 = vmatprep.subr.mxu0 0.0
  %1829 = vmatpush1.msra.mxu0 0.0
  %1830 = vmatprep.subr.mxu0 0.0
  %1831 = vmatpush1.msra.mxu0 0.0
  %1832 = vmatprep.subr.mxu0 0.0
  %1833 = vmatpush1.msra.mxu0 0.0
  %1834 = vmatprep.subr.mxu0 0.0
  %1835 = vmatpush1.msra.mxu0 0.0
  %1836 = vmatprep.subr.mxu0 0.0
  %1837 = vmatpush1.msra.mxu0 0.0
  %1838 = vmatprep.subr.mxu0 0.0
  %1839 = vmatpush1.msra.mxu0 0.0
  %1840 = vmatprep.subr.mxu0 0.0
  %1841 = vmatpush1.msra.mxu0 0.0
  %1842 = vmatprep.subr.mxu0 0.0
  %1843 = vmatpush1.msra.mxu0 0.0
  %1844 = vmatprep.subr.mxu0 0.0
  %1845 = vmatpush1.msra.mxu0 0.0
  %1846 = vmatprep.subr.mxu0 0.0
  %1847 = vmatpush1.msra.mxu0 0.0
  %1848 = vmatprep.subr.mxu0 0.0
  %1849 = vmatpush1.msra.mxu0 0.0
  %1850 = vmatprep.subr.mxu0 0.0
  %1851 = vmatpush1.msra.mxu0 0.0
  %1852 = vmatprep.subr.mxu0 0.0
  %1853 = vmatpush1.msra.mxu0 0.0
  %1854 = vmatprep.subr.mxu0 0.0
  %1855 = vmatpush1.msra.mxu0 0.0
  %1856 = vmatprep.subr.mxu0 0.0
  %1857 = vmatpush1.msra.mxu0 0.0
  %1858 = vmatprep.subr.mxu0 0.0
  %1859 = vmatpush1.msra.mxu0 0.0
  %1860 = vmatprep.subr.mxu0 0.0
  %1861 = vmatpush1.msra.mxu0 0.0
  %1862 = vmatprep.mubr.f32.mxu0 0.0
  %v1863 = vand.u32 %v1355, 4294901760
  %1864 = vmatmul.mubr.f32.gmra.mrb[0].mxu0 %v1863
  %v1865 = vpop.f32.mrb[0].mxu0
  %v1866 = vadd.f32 %v1759, %v1865
  %v1867 = vpop.f32.mrb[0].mxu0
  %1868 = vmatprep.mubr.f32.mxu0 0.0
  %v1869 = vand.u32 %v1358, 4294901760
  %1870 = vmatmul.mubr.f32.gmra.mrb[0].mxu0 %v1869
  %v1871 = vpop.f32.mrb[0].mxu0
  %v1872 = vadd.f32 %v1767, %v1871
  %v1873 = vpop.f32.mrb[0].mxu0
  %1874 = vmatprep.mubr.f32.mxu0 0.0
  %v1875 = vand.u32 %v1361, 4294901760
  %1876 = vmatmul.mubr.f32.gmra.mrb[0].mxu0 %v1875
  %v1877 = vpop.f32.mrb[0].mxu0
  %v1878 = vadd.f32 %v1775, %v1877
  %v1879 = vpop.f32.mrb[0].mxu0
  %1880 = vmatprep.mubr.f32.mxu0 0.0
  %v1881 = vand.u32 %v1364, 4294901760
  %1882 = vmatmul.mubr.f32.gmra.mrb[0].mxu0 %v1881
  %v1883 = vpop.f32.mrb[0].mxu0
  %v1884 = vadd.f32 %v1783, %v1883
  %v1885 = vpop.f32.mrb[0].mxu0
  %1886 = vdwg.mxu0
  %1887 = vmatprep.subr.mxu0 0.0
  %v1888 = vand.u32 %v1342, 4294901760
  %1889 = vmatpush1.msra.mxu0 %v1888
  %1890 = vmatprep.subr.mxu0 0.0
  %v1891 = vand.u32 %v1343, 4294901760
  %1892 = vmatpush1.msra.mxu0 %v1891
  %1893 = vmatprep.subr.mxu0 0.0
  %v1894 = vand.u32 %v1344, 4294901760
  %1895 = vmatpush1.msra.mxu0 %v1894
  %1896 = vmatprep.subr.mxu0 0.0
  %v1897 = vand.u32 %v1345, 4294901760
  %1898 = vmatpush1.msra.mxu0 %v1897
  %1899 = vmatprep.subr.mxu0 0.0
  %1900 = vmatpush1.msra.mxu0 0.0
  %1901 = vmatprep.subr.mxu0 0.0
  %1902 = vmatpush1.msra.mxu0 0.0
  %1903 = vmatprep.subr.mxu0 0.0
  %1904 = vmatpush1.msra.mxu0 0.0
  %1905 = vmatprep.subr.mxu0 0.0
  %1906 = vmatpush1.msra.mxu0 0.0
  %1907 = vmatprep.subr.mxu0 0.0
  %1908 = vmatpush1.msra.mxu0 0.0
  %1909 = vmatprep.subr.mxu0 0.0
  %1910 = vmatpush1.msra.mxu0 0.0
  %1911 = vmatprep.subr.mxu0 0.0
  %1912 = vmatpush1.msra.mxu0 0.0
  %1913 = vmatprep.subr.mxu0 0.0
  %1914 = vmatpush1.msra.mxu0 0.0
  %1915 = vmatprep.subr.mxu0 0.0
  %1916 = vmatpush1.msra.mxu0 0.0
  %1917 = vmatprep.subr.mxu0 0.0
  %1918 = vmatpush1.msra.mxu0 0.0
  %1919 = vmatprep.subr.mxu0 0.0
  %1920 = vmatpush1.msra.mxu0 0.0
  %1921 = vmatprep.subr.mxu0 0.0
  %1922 = vmatpush1.msra.mxu0 0.0
  %1923 = vmatprep.subr.mxu0 0.0
  %1924 = vmatpush1.msra.mxu0 0.0
  %1925 = vmatprep.subr.mxu0 0.0
  %1926 = vmatpush1.msra.mxu0 0.0
  %1927 = vmatprep.subr.mxu0 0.0
  %1928 = vmatpush1.msra.mxu0 0.0
  %1929 = vmatprep.subr.mxu0 0.0
  %1930 = vmatpush1.msra.mxu0 0.0
  %1931 = vmatprep.subr.mxu0 0.0
  %1932 = vmatpush1.msra.mxu0 0.0
  %1933 = vmatprep.subr.mxu0 0.0
  %1934 = vmatpush1.msra.mxu0 0.0
  %1935 = vmatprep.subr.mxu0 0.0
  %1936 = vmatpush1.msra.mxu0 0.0
  %1937 = vmatprep.subr.mxu0 0.0
  %1938 = vmatpush1.msra.mxu0 0.0
  %1939 = vmatprep.subr.mxu0 0.0
  %1940 = vmatpush1.msra.mxu0 0.0
  %1941 = vmatprep.subr.mxu0 0.0
  %1942 = vmatpush1.msra.mxu0 0.0
  %1943 = vmatprep.subr.mxu0 0.0
  %1944 = vmatpush1.msra.mxu0 0.0
  %1945 = vmatprep.subr.mxu0 0.0
  %1946 = vmatpush1.msra.mxu0 0.0
  %1947 = vmatprep.subr.mxu0 0.0
  %1948 = vmatpush1.msra.mxu0 0.0
  %1949 = vmatprep.subr.mxu0 0.0
  %1950 = vmatpush1.msra.mxu0 0.0
  %1951 = vmatprep.subr.mxu0 0.0
  %1952 = vmatpush1.msra.mxu0 0.0
  %1953 = vmatprep.subr.mxu0 0.0
  %1954 = vmatpush1.msra.mxu0 0.0
  %1955 = vmatprep.mubr.f32.mxu0 0.0
  %v1956 = vand.u32 %v1355, 4294901760
  %1957 = vmatmul.mubr.f32.gmra.mrb[0].mxu0 %v1956
  %v1958 = vpop.f32.mrb[0].mxu0
  %v1959 = vadd.f32 %v1866, %v1958
  %v1960 = vpop.f32.mrb[0].mxu0
  %1961 = vmatprep.mubr.f32.mxu0 0.0
  %v1962 = vand.u32 %v1358, 4294901760
  %1963 = vmatmul.mubr.f32.gmra.mrb[0].mxu0 %v1962
  %v1964 = vpop.f32.mrb[0].mxu0
  %v1965 = vadd.f32 %v1872, %v1964
  %v1966 = vpop.f32.mrb[0].mxu0
  %1967 = vmatprep.mubr.f32.mxu0 0.0
  %v1968 = vand.u32 %v1361, 4294901760
  %1969 = vmatmul.mubr.f32.gmra.mrb[0].mxu0 %v1968
  %v1970 = vpop.f32.mrb[0].mxu0
  %v1971 = vadd.f32 %v1878, %v1970
  %v1972 = vpop.f32.mrb[0].mxu0
  %1973 = vmatprep.mubr.f32.mxu0 0.0
  %v1974 = vand.u32 %v1364, 4294901760
  %1975 = vmatmul.mubr.f32.gmra.mrb[0].mxu0 %v1974
  %v1976 = vpop.f32.mrb[0].mxu0
  %v1977 = vadd.f32 %v1884, %v1976
  %v1978 = vpop.f32.mrb[0].mxu0
  %1979 = vdwg.mxu0
  %vm1980 = vcmask 31744
  %1981 = vst.msk [vmem:[%s7] sm:$0xff] %vm1980, %v1959
  %1982 = vst.msk [vmem:[%s7 + $0x8] sm:$0xff] %vm1980, %v1965
  %1983 = vst.msk [vmem:[%s7 + $0x10] sm:$0xff] %vm1980, %v1971
  %1984 = vst.msk [vmem:[%s7 + $0x18] sm:$0xff] %vm1980, %v1977
  // Predicated region
  $region30: #{_qnetwork_forward_impl.1} parent=0 // pred_check
    _
  $region31: #{_qnetwork_forward_impl.1} parent=0 // pred_check_branch
    %1986 = sbr.rel (0) target = $region33
  $region32: #{_qnetwork_forward_impl.1} parent=0 // pred_region
    _
  $region33: #{_qnetwork_forward_impl.1} parent=0 // pred_fallthru
    _
  // Predicated region
  $region34: #{_qnetwork_forward_impl.1} parent=0 // pred_check
    _
  $region35: #{_qnetwork_forward_impl.1} parent=0 // pred_check_branch
    %1988 = sbr.rel (0) target = $region37
  $region36: #{_qnetwork_forward_impl.1} parent=0 // pred_region
    _
  $region37: #{_qnetwork_forward_impl.1} parent=0 // pred_fallthru
    _

</llo_original>
